<compile_context>
chip_gen: v6e
topology: v6e:2x2x1
jax: 0.10.0
libtpu: 0.0.40
codegen_flags: <defaults>
</compile_context>

<pallas_src>
import math

import jax
import jax.numpy as jnp
import numpy as np
from jax import lax
from jax.experimental import pallas as pl
from jax.experimental.pallas import tpu as pltpu

NEG = -1e30  # large-negative additive mask (safe replacement for finfo.min)


def build_static_mask(L, train_len, test_num, chunk):
    """Attach-independent part of the continual mask, as an additive f32 [L, L] array."""
    qi = np.arange(L)[:, None]
    ki = np.arange(L)[None, :]
    causal = ki <= qi
    q_chunk = np.maximum(qi - train_len, 0) // chunk
    k_chunk = np.maximum(ki - train_len, 0) // chunk
    test_key_allowed = (ki >= train_len) & (q_chunk == k_chunk) & causal
    allowed = np.where(qi < train_len, causal, test_key_allowed)
    return jnp.asarray(np.where(allowed, 0.0, NEG), dtype=jnp.float32)


def make_layer_kernel(*, L, hidden, heads, qk_dim, v_dim, train_len, test_num,
                      chunk, tq):
    test_len = test_num * chunk
    assert train_len + test_len == L
    qk_tot = heads * qk_dim
    scale = 1.0 / math.sqrt(qk_dim)

    def kernel(attach_ref,                  # SMEM [B, test_num] int32 (scalar prefetch)
               xf_ref,                      # VMEM [1, L, hidden]  f32 (full seq, resident per batch)
               xt_ref,                      # VMEM [1, tq, hidden] f32 (query tile)
               wq_ref, bq_ref,              # [hidden, qk_tot] bf16, [1, qk_tot] f32
               wkv_ref, bkv_ref,            # [hidden, qk_tot + heads*v_dim] bf16, f32 bias
               wp_ref, bp_ref,              # [heads, v_dim, hidden] bf16, [1, hidden] f32
               mstat_ref,                   # [tq, L] f32 additive static mask tile
               out_ref,                     # [1, tq, hidden] f32
               logit_ref,                   # [1, heads, tq, L] f32 (aux attn_logit)
               k_sc, v_sc, qh_sc):          # VMEM scratch (bf16)
        b = pl.program_id(0)
        qi = pl.program_id(1)

        # ---- once per batch: K/V projection for the full sequence -> [heads, L, d] scratch ----
        @pl.when(qi == 0)
        def _():
            x_all = xf_ref[0].astype(jnp.bfloat16)                      # [L, hidden]
            kv = jnp.dot(x_all, wkv_ref[...],
                         preferred_element_type=jnp.float32) + bkv_ref[...]
            for h in range(heads):                                      # once per batch only
                k_sc[h] = kv[:, h * qk_dim:(h + 1) * qk_dim].astype(jnp.bfloat16)
                v_sc[h] = kv[:, qk_tot + h * v_dim:
                             qk_tot + (h + 1) * v_dim].astype(jnp.bfloat16)

        # ---- per-tile Q projection (1/sqrt(d) folded in once) ----
        x_t = xt_ref[0]                                                 # [tq, hidden] f32
        q_flat = (jnp.dot(x_t.astype(jnp.bfloat16), wq_ref[...],
                          preferred_element_type=jnp.float32) + bq_ref[...]) * scale
        for h in range(heads):
            qh_sc[h] = q_flat[:, h * qk_dim:(h + 1) * qk_dim].astype(jnp.bfloat16)

        # ---- mask: static additive tile + per-query attach threshold ([tq,1] build) ----
        row0 = qi * tq
        g = row0 + lax.broadcasted_iota(jnp.int32, (tq, 1), 0)          # global query index
        thr = jnp.full((tq, 1), -1, jnp.int32)
        for n in range(test_num):
            lo = train_len + n * chunk
            thr = jnp.where((g >= lo) & (g < lo + chunk), attach_ref[b, n], thr)
        k_idx = lax.broadcasted_iota(jnp.int32, (tq, L), 1)
        attach_add = jnp.where(k_idx <= thr, 0.0, NEG)                  # attach in [0, train_len)
        add_mask = jnp.maximum(mstat_ref[...], attach_add)              # [tq, L]

        # ---- attention, batched over heads (leading batch dim -> clean MXU lowering) ----
        logits = jnp.einsum('hqd,hkd->hqk', qh_sc[...], k_sc[...],
                            preferred_element_type=jnp.float32)         # [heads, tq, L] f32
        logits = logits + add_mask[None]
        logit_ref[0] = logits                                           # aux 'attn_logit'

        m = jnp.max(logits, axis=-1, keepdims=True)
        e = jnp.exp(logits - m)
        denom = jnp.sum(e, axis=-1, keepdims=True)
        attn = e * pl.reciprocal(denom, approx=True)                    # EUP divide

        ov = jnp.einsum('hqk,hkd->hqd', attn.astype(jnp.bfloat16), v_sc[...],
                        preferred_element_type=jnp.float32)             # [heads, tq, v_dim]

        # ---- output projection (per-head matmul + sum over heads == concat @ W) + residual ----
        pr = jnp.einsum('hqd,hdo->hqo', ov.astype(jnp.bfloat16), wp_ref[...],
                        preferred_element_type=jnp.float32)             # [heads, tq, hidden]
        out_ref[0] = x_t + jnp.sum(pr, axis=0) + bp_ref[...]            # dropout p=0 -> identity

    return kernel


def continual_attention_layer(x, attach, params, cfg, *, tq=None):
    B, L, hidden = x.shape
    heads, qk_dim, v_dim = cfg['heads'], cfg['qk_dim'], cfg['v_dim']
    train_len, test_num, chunk = cfg['train_len'], cfg['test_num'], cfg['chunk']
    qk_tot = heads * qk_dim
    v_tot = heads * v_dim

    if tq is None:
        tq = L if L <= 128 else 128
    assert L % tq == 0 and (tq % 8 == 0 or tq == L)
    nq = L // tq

    # Weight prep: bf16 for the MXU, biases stay f32; w_proj reshaped to [heads, v_dim, hidden].
    w_q = params['w_qkv'][:, :qk_tot].astype(jnp.bfloat16)
    w_kv = params['w_qkv'][:, qk_tot:].astype(jnp.bfloat16)
    b_q = params['b_qkv'][:, :qk_tot]
    b_kv = params['b_qkv'][:, qk_tot:]
    w_p = params['w_proj'].reshape(heads, v_dim, hidden).astype(jnp.bfloat16)
    b_p = params['b_proj']
    mask_static = build_static_mask(L, train_len, test_num, chunk)

    kernel = make_layer_kernel(L=L, hidden=hidden, heads=heads, qk_dim=qk_dim,
                               v_dim=v_dim, train_len=train_len,
                               test_num=test_num, chunk=chunk, tq=tq)

    grid_spec = pltpu.PrefetchScalarGridSpec(
        num_scalar_prefetch=1,                 # attach_test_after -> SMEM
        grid=(B, nq),
        in_specs=[
            pl.BlockSpec((1, L, hidden), lambda b, q, a: (b, 0, 0)),        # x, full (for K/V)
            pl.BlockSpec((1, tq, hidden), lambda b, q, a: (b, q, 0)),       # x, query tile
            pl.BlockSpec((hidden, qk_tot), lambda b, q, a: (0, 0)),         # w_q
            pl.BlockSpec((1, qk_tot), lambda b, q, a: (0, 0)),              # b_q
            pl.BlockSpec((hidden, qk_tot + v_tot), lambda b, q, a: (0, 0)), # w_kv
            pl.BlockSpec((1, qk_tot + v_tot), lambda b, q, a: (0, 0)),      # b_kv
            pl.BlockSpec((heads, v_dim, hidden), lambda b, q, a: (0, 0, 0)),# w_proj (per-head)
            pl.BlockSpec((1, hidden), lambda b, q, a: (0, 0)),              # b_proj
            pl.BlockSpec((tq, L), lambda b, q, a: (q, 0)),                  # static mask tile
        ],
        out_specs=[
            pl.BlockSpec((1, tq, hidden), lambda b, q, a: (b, q, 0)),       # residual output
            pl.BlockSpec((1, heads, tq, L), lambda b, q, a: (b, 0, q, 0)),  # aux attn_logit
        ],
        scratch_shapes=[
            pltpu.VMEM((heads, L, qk_dim), jnp.bfloat16),   # K, per-head layout
            pltpu.VMEM((heads, L, v_dim), jnp.bfloat16),    # V, per-head layout
            pltpu.VMEM((heads, tq, qk_dim), jnp.bfloat16),  # Q tile, per-head layout
        ],
    )

    out_shapes = (
        jax.ShapeDtypeStruct((B, L, hidden), jnp.float32),
        jax.ShapeDtypeStruct((B, heads, L, L), jnp.float32),
    )

    fn = pl.pallas_call(
        kernel,
        out_shape=out_shapes,
        grid_spec=grid_spec,
        compiler_params=pltpu.CompilerParams(
            dimension_semantics=("parallel", "arbitrary")),
    )
    return fn(attach, x, x, w_q, b_q, w_kv, b_kv, w_p, b_p, mask_static)


def reference_forward(x, attach, params, cfg):
    """Pure-JAX f32 reference mirroring the PyTorch module (vanilla attention path)."""
    B, L, hidden = x.shape
    heads, qk_dim, v_dim = cfg['heads'], cfg['qk_dim'], cfg['v_dim']
    train_len, test_num, chunk = cfg['train_len'], cfg['test_num'], cfg['chunk']
    qk_tot = heads * qk_dim

    qkv = x @ params['w_qkv'] + params['b_qkv']
    q = qkv[..., :qk_tot].reshape(B, L, heads, qk_dim).transpose(0, 2, 1, 3)
    k = qkv[..., qk_tot:2 * qk_tot].reshape(B, L, heads, qk_dim).transpose(0, 2, 1, 3)
    v = qkv[..., 2 * qk_tot:].reshape(B, L, heads, v_dim).transpose(0, 2, 1, 3)

    logits = jnp.einsum('bhmd,bhnd->bhmn', q, k) / math.sqrt(qk_dim)

    qi = jnp.arange(L)[:, None]
    ki = jnp.arange(L)[None, :]
    causal = ki <= qi
    q_chunk = jnp.maximum(qi - train_len, 0) // chunk
    k_chunk = jnp.maximum(ki - train_len, 0) // chunk
    test_key_allowed = (ki >= train_len) & (q_chunk == k_chunk) & causal
    chunk_of_q = jnp.clip((jnp.arange(L) - train_len) // chunk, 0, test_num - 1)
    thr = jnp.where(jnp.arange(L)[None, :] >= train_len,
                    attach[:, chunk_of_q], -1)                               # [B, L]
    train_key_allowed = (ki[None] < train_len) & (ki[None] <= thr[:, :, None])
    allowed = jnp.where(qi[None] < train_len, causal[None],
                        test_key_allowed[None] | train_key_allowed)
    add_mask = jnp.where(allowed, 0.0, NEG)[:, None]

    logits = logits + add_mask
    attn = jax.nn.softmax(logits, axis=-1)
    out = jnp.einsum('bhmn,bhnd->bhmd', attn, v)
    out = out.transpose(0, 2, 1, 3).reshape(B, L, heads * v_dim)
    y = x + out @ params['w_proj'] + params['b_proj']
    return y, logits


if __name__ == "__main__":
    # config ('vanilla' tf_attn path; tf_dropout=0.0 -> identity). L = train_len + test_num*chunk.
    cfg = dict(heads=2, qk_dim=8, v_dim=8, train_len=8, test_num=2, chunk=4)
    B, hidden = 2, 32
    L = cfg['train_len'] + cfg['test_num'] * cfg['chunk']          # 16 -> two query tiles of 8
    qkv_out = cfg['heads'] * (2 * cfg['qk_dim'] + cfg['v_dim'])

    key = jax.random.PRNGKey(0)
    kx, k1, k2, k3, k4 = jax.random.split(key, 5)
    x = jax.random.normal(kx, (B, L, hidden), dtype=jnp.float32)
    params = {
        'w_qkv': 0.1 * jax.random.normal(k1, (hidden, qkv_out), dtype=jnp.float32),
        'b_qkv': 0.1 * jax.random.normal(k2, (1, qkv_out), dtype=jnp.float32),
        'w_proj': 0.1 * jax.random.normal(k3, (cfg['heads'] * cfg['v_dim'], hidden),
                                          dtype=jnp.float32),
        'b_proj': 0.1 * jax.random.normal(k4, (1, hidden), dtype=jnp.float32),
    }
    # attach_test_after[b, n] in [0, train_len-1]
    attach = jnp.array([[1, 6], [0, 4]], dtype=jnp.int32)

    y, attn_logit = continual_attention_layer(x, attach, params, cfg, tq=8)
    jax.block_until_ready((y, attn_logit))

    y_ref, logit_ref = reference_forward(x, attach, params, cfg)
    # bf16 MXU matmuls (f32 accumulation) vs f32 reference -> loose-but-meaningful tolerance.
    np.testing.assert_allclose(np.asarray(y), np.asarray(y_ref), rtol=5e-2, atol=5e-2)
    np.testing.assert_allclose(np.asarray(attn_logit), np.asarray(logit_ref),
                               rtol=5e-2, atol=5e-2)
    # TODO(synk): 'elu'/'favor' feature-map branches, past_state KV concat and train-mode
    # dropout are not implemented (vanilla softmax / eval path only, as selected by the config).
    print("KERNEL_OK")
</pallas_src>

<mosaic_0001>
module attributes {stable_mosaic.version = 11 : i64} {
  func.func @kernel(%arg0: i32, %arg1: i32, %arg2: memref<2x2xi32, #tpu.memory_space<smem>>, %arg3: memref<1x16x32xf32, #tpu.memory_space<vmem>>, %arg4: memref<1x8x32xf32, #tpu.memory_space<vmem>>, %arg5: memref<32x16xbf16, #tpu.memory_space<vmem>>, %arg6: memref<1x16xf32, #tpu.memory_space<vmem>>, %arg7: memref<32x32xbf16, #tpu.memory_space<vmem>>, %arg8: memref<1x32xf32, #tpu.memory_space<vmem>>, %arg9: memref<2x8x32xbf16, #tpu.memory_space<vmem>>, %arg10: memref<1x32xf32, #tpu.memory_space<vmem>>, %arg11: memref<8x16xf32, #tpu.memory_space<vmem>>, %arg12: memref<1x8x32xf32, #tpu.memory_space<vmem>>, %arg13: memref<1x2x8x16xf32, #tpu.memory_space<vmem>>, %arg14: memref<2x16x8xbf16, #tpu.memory_space<vmem>>, %arg15: memref<2x16x8xbf16, #tpu.memory_space<vmem>>, %arg16: memref<2x8x8xbf16, #tpu.memory_space<vmem>>) attributes {dimension_semantics = [#tpu.dimension_semantics<parallel>, #tpu.dimension_semantics<arbitrary>], iteration_bounds = array<i64: 2, 2>, scalar_prefetch = 1 : i64, scratch_operands = 3 : i64, tpu.core_type = #tpu.core_type<tc>, window_params = [{transform_indices = @transform_0, window_bounds = array<i64: 1, 16, 32>}, {transform_indices = @transform_1, window_bounds = array<i64: 1, 8, 32>}, {pipeline_mode = #tpu.pipeline_mode<synchronous>, transform_indices = @transform_2, window_bounds = array<i64: 32, 16>}, {pipeline_mode = #tpu.pipeline_mode<synchronous>, transform_indices = @transform_3, window_bounds = array<i64: 1, 16>}, {pipeline_mode = #tpu.pipeline_mode<synchronous>, transform_indices = @transform_4, window_bounds = array<i64: 32, 32>}, {pipeline_mode = #tpu.pipeline_mode<synchronous>, transform_indices = @transform_5, window_bounds = array<i64: 1, 32>}, {pipeline_mode = #tpu.pipeline_mode<synchronous>, transform_indices = @transform_6, window_bounds = array<i64: 2, 8, 32>}, {pipeline_mode = #tpu.pipeline_mode<synchronous>, transform_indices = @transform_7, window_bounds = array<i64: 1, 32>}, {transform_indices = @transform_8, window_bounds = array<i64: 8, 16>}, {transform_indices = @transform_9, window_bounds = array<i64: 1, 8, 32>}, {transform_indices = @transform_10, window_bounds = array<i64: 1, 2, 8, 16>}]} {
    %c0_i32 = arith.constant 0 : i32
    %0 = arith.cmpi eq, %arg1, %c0_i32 : i32
    %1 = arith.extui %0 : i1 to i32
    %c0_i32_0 = arith.constant 0 : i32
    %2 = arith.cmpi ne, %1, %c0_i32_0 : i32
    scf.if %2 {
      %c0_48 = arith.constant 0 : index
      %c0_49 = arith.constant 0 : index
      %c0_50 = arith.constant 0 : index
      %87 = vector.load %arg3[%c0_48, %c0_49, %c0_50] : memref<1x16x32xf32, #tpu.memory_space<vmem>>, vector<1x16x32xf32>
      %88 = vector.shape_cast %87 : vector<1x16x32xf32> to vector<16x32xf32>
      %89 = arith.truncf %88 : vector<16x32xf32> to vector<16x32xbf16>
      %c0_51 = arith.constant 0 : index
      %c0_52 = arith.constant 0 : index
      %90 = vector.load %arg7[%c0_51, %c0_52] : memref<32x32xbf16, #tpu.memory_space<vmem>>, vector<32x32xbf16>
      %cst_53 = arith.constant dense<0.000000e+00> : vector<16x32xf32>
      %91 = tpu.matmul %89, %90, %cst_53 {dimension_numbers = #tpu.dot_dimension_numbers<[1], [0], [0], [1], [0, 0, 1, 1], [], []>} : vector<16x32xbf16>, vector<32x32xbf16>, vector<16x32xf32> -> vector<16x32xf32>
      %c0_54 = arith.constant 0 : index
      %c0_55 = arith.constant 0 : index
      %92 = vector.load %arg8[%c0_54, %c0_55] : memref<1x32xf32, #tpu.memory_space<vmem>>, vector<1x32xf32>
      %93 = vector.broadcast %92 : vector<1x32xf32> to vector<16x32xf32>
      %94 = arith.addf %91, %93 : vector<16x32xf32>
      %95 = vector.extract_strided_slice %94 {offsets = [0, 0], sizes = [16, 8], strides = [1, 1]} : vector<16x32xf32> to vector<16x8xf32>
      %96 = arith.truncf %95 : vector<16x8xf32> to vector<16x8xbf16>
      %c0_56 = arith.constant 0 : index
      %c0_57 = arith.constant 0 : index
      %c0_58 = arith.constant 0 : index
      %97 = vector.load %arg14[%c0_56, %c0_57, %c0_58] : memref<2x16x8xbf16, #tpu.memory_space<vmem>>, vector<1x16x8xbf16>
      %98 = vector.shape_cast %97 : vector<1x16x8xbf16> to vector<16x8xbf16>
      %99 = vector.shape_cast %96 : vector<16x8xbf16> to vector<1x16x8xbf16>
      tpu.vector_store %arg14[%c0_56, %c0_57, %c0_58], %99 {strides = array<i32>} : memref<2x16x8xbf16, #tpu.memory_space<vmem>>, vector<1x16x8xbf16>,
      %100 = vector.extract_strided_slice %94 {offsets = [0, 16], sizes = [16, 8], strides = [1, 1]} : vector<16x32xf32> to vector<16x8xf32>
      %101 = arith.truncf %100 : vector<16x8xf32> to vector<16x8xbf16>
      %c0_59 = arith.constant 0 : index
      %c0_60 = arith.constant 0 : index
      %c0_61 = arith.constant 0 : index
      %102 = vector.load %arg15[%c0_59, %c0_60, %c0_61] : memref<2x16x8xbf16, #tpu.memory_space<vmem>>, vector<1x16x8xbf16>
      %103 = vector.shape_cast %102 : vector<1x16x8xbf16> to vector<16x8xbf16>
      %104 = vector.shape_cast %101 : vector<16x8xbf16> to vector<1x16x8xbf16>
      tpu.vector_store %arg15[%c0_59, %c0_60, %c0_61], %104 {strides = array<i32>} : memref<2x16x8xbf16, #tpu.memory_space<vmem>>, vector<1x16x8xbf16>,
      %105 = vector.extract_strided_slice %94 {offsets = [0, 8], sizes = [16, 8], strides = [1, 1]} : vector<16x32xf32> to vector<16x8xf32>
      %106 = arith.truncf %105 : vector<16x8xf32> to vector<16x8xbf16>
      %c1_62 = arith.constant 1 : index
      %c0_63 = arith.constant 0 : index
      %c0_64 = arith.constant 0 : index
      %107 = vector.load %arg14[%c1_62, %c0_63, %c0_64] : memref<2x16x8xbf16, #tpu.memory_space<vmem>>, vector<1x16x8xbf16>
      %108 = vector.shape_cast %107 : vector<1x16x8xbf16> to vector<16x8xbf16>
      %109 = vector.shape_cast %106 : vector<16x8xbf16> to vector<1x16x8xbf16>
      tpu.vector_store %arg14[%c1_62, %c0_63, %c0_64], %109 {strides = array<i32>} : memref<2x16x8xbf16, #tpu.memory_space<vmem>>, vector<1x16x8xbf16>,
      %110 = vector.extract_strided_slice %94 {offsets = [0, 24], sizes = [16, 8], strides = [1, 1]} : vector<16x32xf32> to vector<16x8xf32>
      %111 = arith.truncf %110 : vector<16x8xf32> to vector<16x8xbf16>
      %c1_65 = arith.constant 1 : index
      %c0_66 = arith.constant 0 : index
      %c0_67 = arith.constant 0 : index
      %112 = vector.load %arg15[%c1_65, %c0_66, %c0_67] : memref<2x16x8xbf16, #tpu.memory_space<vmem>>, vector<1x16x8xbf16>
      %113 = vector.shape_cast %112 : vector<1x16x8xbf16> to vector<16x8xbf16>
      %114 = vector.shape_cast %111 : vector<16x8xbf16> to vector<1x16x8xbf16>
      tpu.vector_store %arg15[%c1_65, %c0_66, %c0_67], %114 {strides = array<i32>} : memref<2x16x8xbf16, #tpu.memory_space<vmem>>, vector<1x16x8xbf16>,
    } else {
    }
    %c0 = arith.constant 0 : index
    %c0_1 = arith.constant 0 : index
    %c0_2 = arith.constant 0 : index
    %3 = vector.load %arg4[%c0, %c0_1, %c0_2] : memref<1x8x32xf32, #tpu.memory_space<vmem>>, vector<1x8x32xf32>
    %4 = vector.shape_cast %3 : vector<1x8x32xf32> to vector<8x32xf32>
    %5 = arith.truncf %4 : vector<8x32xf32> to vector<8x32xbf16>
    %c0_3 = arith.constant 0 : index
    %c0_4 = arith.constant 0 : index
    %6 = vector.load %arg5[%c0_3, %c0_4] : memref<32x16xbf16, #tpu.memory_space<vmem>>, vector<32x16xbf16>
    %cst = arith.constant dense<0.000000e+00> : vector<8x16xf32>
    %7 = tpu.matmul %5, %6, %cst {dimension_numbers = #tpu.dot_dimension_numbers<[1], [0], [0], [1], [0, 0, 1, 1], [], []>} : vector<8x32xbf16>, vector<32x16xbf16>, vector<8x16xf32> -> vector<8x16xf32>
    %c0_5 = arith.constant 0 : index
    %c0_6 = arith.constant 0 : index
    %8 = vector.load %arg6[%c0_5, %c0_6] : memref<1x16xf32, #tpu.memory_space<vmem>>, vector<1x16xf32>
    %9 = vector.broadcast %8 : vector<1x16xf32> to vector<8x16xf32>
    %10 = arith.addf %7, %9 : vector<8x16xf32>
    %cst_7 = arith.constant 0.353553385 : f32
    %11 = vector.broadcast %cst_7 : f32 to vector<8x16xf32>
    %12 = arith.mulf %10, %11 : vector<8x16xf32>
    %13 = vector.extract_strided_slice %12 {offsets = [0, 0], sizes = [8, 8], strides = [1, 1]} : vector<8x16xf32> to vector<8x8xf32>
    %14 = arith.truncf %13 : vector<8x8xf32> to vector<8x8xbf16>
    %c0_8 = arith.constant 0 : index
    %c0_9 = arith.constant 0 : index
    %c0_10 = arith.constant 0 : index
    %15 = vector.load %arg16[%c0_8, %c0_9, %c0_10] : memref<2x8x8xbf16, #tpu.memory_space<vmem>>, vector<1x8x8xbf16>
    %16 = vector.shape_cast %15 : vector<1x8x8xbf16> to vector<8x8xbf16>
    %17 = vector.shape_cast %14 : vector<8x8xbf16> to vector<1x8x8xbf16>
    tpu.vector_store %arg16[%c0_8, %c0_9, %c0_10], %17 {strides = array<i32>} : memref<2x8x8xbf16, #tpu.memory_space<vmem>>, vector<1x8x8xbf16>,
    %18 = vector.extract_strided_slice %12 {offsets = [0, 8], sizes = [8, 8], strides = [1, 1]} : vector<8x16xf32> to vector<8x8xf32>
    %19 = arith.truncf %18 : vector<8x8xf32> to vector<8x8xbf16>
    %c1 = arith.constant 1 : index
    %c0_11 = arith.constant 0 : index
    %c0_12 = arith.constant 0 : index
    %20 = vector.load %arg16[%c1, %c0_11, %c0_12] : memref<2x8x8xbf16, #tpu.memory_space<vmem>>, vector<1x8x8xbf16>
    %21 = vector.shape_cast %20 : vector<1x8x8xbf16> to vector<8x8xbf16>
    %22 = vector.shape_cast %19 : vector<8x8xbf16> to vector<1x8x8xbf16>
    tpu.vector_store %arg16[%c1, %c0_11, %c0_12], %22 {strides = array<i32>} : memref<2x8x8xbf16, #tpu.memory_space<vmem>>, vector<1x8x8xbf16>,
    %c8_i32 = arith.constant 8 : i32
    %23 = arith.muli %arg1, %c8_i32 : i32
    %24 = tpu.iota {dimensions = array<i32: 0>} : vector<8x1xi32>
    %25 = vector.broadcast %23 : i32 to vector<8x1xi32>
    %26 = arith.addi %25, %24 : vector<8x1xi32>
    %c-1_i32 = arith.constant -1 : i32
    %27 = vector.broadcast %c-1_i32 : i32 to vector<8x1xi32>
    %c8_i32_13 = arith.constant 8 : i32
    %28 = vector.broadcast %c8_i32_13 : i32 to vector<8x1xi32>
    %29 = arith.cmpi sge, %26, %28 : vector<8x1xi32>
    %c12_i32 = arith.constant 12 : i32
    %30 = vector.broadcast %c12_i32 : i32 to vector<8x1xi32>
    %31 = arith.cmpi slt, %26, %30 : vector<8x1xi32>
    %32 = arith.andi %29, %31 : vector<8x1xi1>
    %33 = arith.index_cast %arg0 : i32 to index
    %c0_14 = arith.constant 0 : index
    %34 = memref.load %arg2[%33, %c0_14] : memref<2x2xi32, #tpu.memory_space<smem>>
    %35 = vector.broadcast %34 : i32 to vector<8x1xi32>
    %36 = arith.select %32, %35, %27 : vector<8x1xi1>, vector<8x1xi32>
    %c12_i32_15 = arith.constant 12 : i32
    %37 = vector.broadcast %c12_i32_15 : i32 to vector<8x1xi32>
    %38 = arith.cmpi sge, %26, %37 : vector<8x1xi32>
    %c16_i32 = arith.constant 16 : i32
    %39 = vector.broadcast %c16_i32 : i32 to vector<8x1xi32>
    %40 = arith.cmpi slt, %26, %39 : vector<8x1xi32>
    %41 = arith.andi %38, %40 : vector<8x1xi1>
    %42 = arith.index_cast %arg0 : i32 to index
    %c1_16 = arith.constant 1 : index
    %43 = memref.load %arg2[%42, %c1_16] : memref<2x2xi32, #tpu.memory_space<smem>>
    %44 = vector.broadcast %43 : i32 to vector<8x1xi32>
    %45 = arith.select %41, %44, %36 : vector<8x1xi1>, vector<8x1xi32>
    %46 = tpu.iota {dimensions = array<i32: 1>} : vector<8x16xi32>
    %47 = vector.broadcast %45 : vector<8x1xi32> to vector<8x16xi32>
    %48 = arith.cmpi sle, %46, %47 : vector<8x16xi32>
    %cst_17 = arith.constant 0.000000e+00 : f32
    %cst_18 = arith.constant -1.000000e+30 : f32
    %49 = vector.broadcast %cst_17 : f32 to vector<8x16xf32>
    %50 = vector.broadcast %cst_18 : f32 to vector<8x16xf32>
    %51 = arith.select %48, %49, %50 : vector<8x16xi1>, vector<8x16xf32>
    %c0_19 = arith.constant 0 : index
    %c0_20 = arith.constant 0 : index
    %52 = vector.load %arg11[%c0_19, %c0_20] : memref<8x16xf32, #tpu.memory_space<vmem>>, vector<8x16xf32>
    %53 = arith.maximumf %52, %51 : vector<8x16xf32>
    %c0_21 = arith.constant 0 : index
    %c0_22 = arith.constant 0 : index
    %c0_23 = arith.constant 0 : index
    %54 = vector.load %arg16[%c0_21, %c0_22, %c0_23] : memref<2x8x8xbf16, #tpu.memory_space<vmem>>, vector<2x8x8xbf16>
    %c0_24 = arith.constant 0 : index
    %c0_25 = arith.constant 0 : index
    %c0_26 = arith.constant 0 : index
    %55 = vector.load %arg14[%c0_24, %c0_25, %c0_26] : memref<2x16x8xbf16, #tpu.memory_space<vmem>>, vector<2x16x8xbf16>
    "tpu.trace_start"() <{level = 10 : i32, message = "hqd,hkd->hqk"}> : () -> ()
    %cst_27 = arith.constant dense<0.000000e+00> : vector<2x8x16xf32>
    %56 = tpu.matmul %54, %55, %cst_27 {dimension_numbers = #tpu.dot_dimension_numbers<[2], [2], [1], [1], [0, 0, 0, 1, 1, 1], [0], [0]>} : vector<2x8x8xbf16>, vector<2x16x8xbf16>, vector<2x8x16xf32> -> vector<2x8x16xf32>
    "tpu.trace_stop"() : () -> ()
    %57 = vector.shape_cast %53 : vector<8x16xf32> to vector<1x8x16xf32>
    %58 = vector.broadcast %57 : vector<1x8x16xf32> to vector<2x8x16xf32>
    %59 = arith.addf %56, %58 : vector<2x8x16xf32>
    %c0_28 = arith.constant 0 : index
    %c0_29 = arith.constant 0 : index
    %c0_30 = arith.constant 0 : index
    %c0_31 = arith.constant 0 : index
    %60 = vector.load %arg13[%c0_28, %c0_29, %c0_30, %c0_31] : memref<1x2x8x16xf32, #tpu.memory_space<vmem>>, vector<1x2x8x16xf32>
    %61 = vector.shape_cast %60 : vector<1x2x8x16xf32> to vector<2x8x16xf32>
    %62 = vector.shape_cast %59 : vector<2x8x16xf32> to vector<1x2x8x16xf32>
    tpu.vector_store %arg13[%c0_28, %c0_29, %c0_30, %c0_31], %62 {strides = array<i32>} : memref<1x2x8x16xf32, #tpu.memory_space<vmem>>, vector<1x2x8x16xf32>,
    %cst_32 = arith.constant dense<0xFF800000> : vector<2x8xf32>
    %63 = vector.multi_reduction <maximumf>, %59, %cst_32 [2] : vector<2x8x16xf32> to vector<2x8xf32>
    %64 = vector.shape_cast %63 : vector<2x8xf32> to vector<2x8x1xf32>
    %65 = vector.broadcast %64 : vector<2x8x1xf32> to vector<2x8x16xf32>
    %66 = arith.subf %59, %65 : vector<2x8x16xf32>
    %67 = math.exp %66 : vector<2x8x16xf32>
    %cst_33 = arith.constant dense<0.000000e+00> : vector<2x8xf32>
    %68 = vector.multi_reduction <add>, %67, %cst_33 [2] : vector<2x8x16xf32> to vector<2x8xf32>
    %69 = vector.shape_cast %68 : vector<2x8xf32> to vector<2x8x1xf32>
    %70 = tpu.reciprocal %69 {approx = true} : vector<2x8x1xf32> -> vector<2x8x1xf32>
    %71 = vector.broadcast %70 : vector<2x8x1xf32> to vector<2x8x16xf32>
    %72 = arith.mulf %67, %71 : vector<2x8x16xf32>
    %73 = arith.truncf %72 : vector<2x8x16xf32> to vector<2x8x16xbf16>
    %c0_34 = arith.constant 0 : index
    %c0_35 = arith.constant 0 : index
    %c0_36 = arith.constant 0 : index
    %74 = vector.load %arg15[%c0_34, %c0_35, %c0_36] : memref<2x16x8xbf16, #tpu.memory_space<vmem>>, vector<2x16x8xbf16>
    "tpu.trace_start"() <{level = 10 : i32, message = "hqk,hkd->hqd"}> : () -> ()
    %cst_37 = arith.constant dense<0.000000e+00> : vector<2x8x8xf32>
    %75 = tpu.matmul %73, %74, %cst_37 {dimension_numbers = #tpu.dot_dimension_numbers<[2], [1], [1], [2], [0, 0, 0, 1, 1, 2], [0], [0]>} : vector<2x8x16xbf16>, vector<2x16x8xbf16>, vector<2x8x8xf32> -> vector<2x8x8xf32>
    "tpu.trace_stop"() : () -> ()
    %76 = arith.truncf %75 : vector<2x8x8xf32> to vector<2x8x8xbf16>
    %c0_38 = arith.constant 0 : index
    %c0_39 = arith.constant 0 : index
    %c0_40 = arith.constant 0 : index
    %77 = vector.load %arg9[%c0_38, %c0_39, %c0_40] : memref<2x8x32xbf16, #tpu.memory_space<vmem>>, vector<2x8x32xbf16>
    "tpu.trace_start"() <{level = 10 : i32, message = "hqd,hdo->hqo"}> : () -> ()
    %cst_41 = arith.constant dense<0.000000e+00> : vector<2x8x32xf32>
    %78 = tpu.matmul %76, %77, %cst_41 {dimension_numbers = #tpu.dot_dimension_numbers<[2], [1], [1], [2], [0, 0, 0, 1, 1, 2], [0], [0]>} : vector<2x8x8xbf16>, vector<2x8x32xbf16>, vector<2x8x32xf32> -> vector<2x8x32xf32>
    "tpu.trace_stop"() : () -> ()
    %cst_42 = arith.constant dense<0.000000e+00> : vector<8x32xf32>
    %79 = vector.multi_reduction <add>, %78, %cst_42 [0] : vector<2x8x32xf32> to vector<8x32xf32>
    %80 = arith.addf %4, %79 : vector<8x32xf32>
    %c0_43 = arith.constant 0 : index
    %c0_44 = arith.constant 0 : index
    %81 = vector.load %arg10[%c0_43, %c0_44] : memref<1x32xf32, #tpu.memory_space<vmem>>, vector<1x32xf32>
    %82 = vector.broadcast %81 : vector<1x32xf32> to vector<8x32xf32>
    %83 = arith.addf %80, %82 : vector<8x32xf32>
    %c0_45 = arith.constant 0 : index
    %c0_46 = arith.constant 0 : index
    %c0_47 = arith.constant 0 : index
    %84 = vector.load %arg12[%c0_45, %c0_46, %c0_47] : memref<1x8x32xf32, #tpu.memory_space<vmem>>, vector<1x8x32xf32>
    %85 = vector.shape_cast %84 : vector<1x8x32xf32> to vector<8x32xf32>
    %86 = vector.shape_cast %83 : vector<8x32xf32> to vector<1x8x32xf32>
    tpu.vector_store %arg12[%c0_45, %c0_46, %c0_47], %86 {strides = array<i32>} : memref<1x8x32xf32, #tpu.memory_space<vmem>>, vector<1x8x32xf32>,
    return
  }
  func.func @transform_0(%arg0: i32, %arg1: i32, %arg2: memref<2x2xi32, #tpu.memory_space<smem>>) -> (i32, i32, i32) {
    %c0_i32 = arith.constant 0 : i32
    %c0_i32_0 = arith.constant 0 : i32
    %c0_i32_1 = arith.constant 0 : i32
    return %arg0, %c0_i32, %c0_i32_0 : i32, i32, i32
  }
  func.func @transform_1(%arg0: i32, %arg1: i32, %arg2: memref<2x2xi32, #tpu.memory_space<smem>>) -> (i32, i32, i32) {
    %c0_i32 = arith.constant 0 : i32
    %c0_i32_0 = arith.constant 0 : i32
    return %arg0, %arg1, %c0_i32 : i32, i32, i32
  }
  func.func @transform_2(%arg0: i32, %arg1: i32, %arg2: memref<2x2xi32, #tpu.memory_space<smem>>) -> (i32, i32) {
    %c0_i32 = arith.constant 0 : i32
    %c0_i32_0 = arith.constant 0 : i32
    %c0_i32_1 = arith.constant 0 : i32
    return %c0_i32, %c0_i32_0 : i32, i32
  }
  func.func @transform_3(%arg0: i32, %arg1: i32, %arg2: memref<2x2xi32, #tpu.memory_space<smem>>) -> (i32, i32) {
    %c0_i32 = arith.constant 0 : i32
    %c0_i32_0 = arith.constant 0 : i32
    %c0_i32_1 = arith.constant 0 : i32
    return %c0_i32, %c0_i32_0 : i32, i32
  }
  func.func @transform_4(%arg0: i32, %arg1: i32, %arg2: memref<2x2xi32, #tpu.memory_space<smem>>) -> (i32, i32) {
    %c0_i32 = arith.constant 0 : i32
    %c0_i32_0 = arith.constant 0 : i32
    %c0_i32_1 = arith.constant 0 : i32
    return %c0_i32, %c0_i32_0 : i32, i32
  }
  func.func @transform_5(%arg0: i32, %arg1: i32, %arg2: memref<2x2xi32, #tpu.memory_space<smem>>) -> (i32, i32) {
    %c0_i32 = arith.constant 0 : i32
    %c0_i32_0 = arith.constant 0 : i32
    %c0_i32_1 = arith.constant 0 : i32
    return %c0_i32, %c0_i32_0 : i32, i32
  }
  func.func @transform_6(%arg0: i32, %arg1: i32, %arg2: memref<2x2xi32, #tpu.memory_space<smem>>) -> (i32, i32, i32) {
    %c0_i32 = arith.constant 0 : i32
    %c0_i32_0 = arith.constant 0 : i32
    %c0_i32_1 = arith.constant 0 : i32
    %c0_i32_2 = arith.constant 0 : i32
    return %c0_i32, %c0_i32_0, %c0_i32_1 : i32, i32, i32
  }
  func.func @transform_7(%arg0: i32, %arg1: i32, %arg2: memref<2x2xi32, #tpu.memory_space<smem>>) -> (i32, i32) {
    %c0_i32 = arith.constant 0 : i32
    %c0_i32_0 = arith.constant 0 : i32
    %c0_i32_1 = arith.constant 0 : i32
    return %c0_i32, %c0_i32_0 : i32, i32
  }
  func.func @transform_8(%arg0: i32, %arg1: i32, %arg2: memref<2x2xi32, #tpu.memory_space<smem>>) -> (i32, i32) {
    %c0_i32 = arith.constant 0 : i32
    %c0_i32_0 = arith.constant 0 : i32
    return %arg1, %c0_i32 : i32, i32
  }
  func.func @transform_9(%arg0: i32, %arg1: i32, %arg2: memref<2x2xi32, #tpu.memory_space<smem>>) -> (i32, i32, i32) {
    %c0_i32 = arith.constant 0 : i32
    %c0_i32_0 = arith.constant 0 : i32
    return %arg0, %arg1, %c0_i32 : i32, i32, i32
  }
  func.func @transform_10(%arg0: i32, %arg1: i32, %arg2: memref<2x2xi32, #tpu.memory_space<smem>>) -> (i32, i32, i32, i32) {
    %c0_i32 = arith.constant 0 : i32
    %c0_i32_0 = arith.constant 0 : i32
    %c0_i32_1 = arith.constant 0 : i32
    return %arg0, %c0_i32, %arg1, %c0_i32_0 : i32, i32, i32, i32
  }
}

</mosaic_0001>

<llo_original>
// kernel: tpu_custom_call.1
$region0: #{tpu_custom_call.1}
  #allocation0 [shape = 'u32[]', space=smem, size = 0x4, offset = 0x4, fixed_abs, tag = 'smem constant byte address 0x4 - core index']
  #allocation1 [shape = 'u32[144,128]{1,0:T(1,128)}', space=vmem, size = 0x12000, scoped, tag = 'internal scratch']
  #allocation2 [shape = 'bf16[2,16,8]{2,1,0:T(8,128)(2,1)}', space=vmem, size = 0x2000, scoped, tag = 'scratch operand']
  #allocation3 [shape = 'bf16[2,16,8]{2,1,0:T(8,128)(2,1)}', space=vmem, size = 0x2000, scoped, tag = 'scratch operand']
  #allocation4 [shape = 'bf16[2,8,8]{2,1,0:T(8,128)(2,1)}', space=vmem, size = 0x1000, scoped, tag = 'scratch operand']
  #allocation5 [shape = 's32[1]{0}', space=sflag, size = 0x4, scoped, tag = 'scoped memory for tpu_custom_call.1']
  #allocation6 [shape = 'u8[1024]{0}', space=smem, size = 0x400, scoped, tag = 'prefetched SMEM operand 0']
  %s0 = inlined_call_operand.hbm [shape: s32[2,2], index: 0, kind: input, shape index: {}]
  %s1 = inlined_call_operand.hbm [shape: f32[2,16,32], index: 1, kind: input, shape index: {}]
  %s2 = inlined_call_operand.hbm [shape: f32[2,16,32], index: 2, kind: input, shape index: {}]
  %s3 = inlined_call_operand.vmem [shape: bf16[32,16], index: 3, kind: input, shape index: {}]
  %s4 = inlined_call_operand.vmem [shape: f32[1,16], index: 4, kind: input, shape index: {}]
  %s5 = inlined_call_operand.vmem [shape: bf16[32,32], index: 5, kind: input, shape index: {}]
  %s6 = inlined_call_operand.vmem [shape: f32[1,32], index: 6, kind: input, shape index: {}]
  %s7 = inlined_call_operand.hbm [shape: bf16[2,8,32], index: 7, kind: input, shape index: {}]
  %s8 = inlined_call_operand.vmem [shape: f32[1,32], index: 8, kind: input, shape index: {}]
  %s9 = inlined_call_operand.vmem [shape: f32[16,16], index: 9, kind: input, shape index: {}]
  %s10 = inlined_call_operand.hbm [shape: f32[2,16,32], index: 10, kind: output, shape index: {0}]
  %s11 = inlined_call_operand.hbm [shape: f32[2,2,16,16], index: 11, kind: output, shape index: {1}]
  %12 = xla_tuple %s10, %s11
  %s13 = sld [smem:[#allocation0]]
  $region93: #{tpu_custom_call.1} parent=0
    _
  %s15 = ssub.s32 1, %s13
  %s16 = scalar_select 0, %s15, %s13
  %18 = dma.hbm_to_smem %s0, 32, [#allocation6], [#allocation5]
  %19 = dma.done [#allocation5], 32
  %20 = sfence
  $region1: #{tpu_custom_call.1} parent=0
    #allocation7 [shape = 'u8[16384]{0}', space=vmem, size = 0x4000, scoped, tag = 'input window, operand 1']
    #allocation8 [shape = 's32[2]{0}', space=sflag, size = 0x8, scoped, tag = 'scoped memory for tpu_custom_call.1']
    #allocation9 [shape = 's32[2]{0}', space=sflag, size = 0x8, scoped, tag = 'scoped memory for tpu_custom_call.1']
    #allocation10 [shape = 'u8[8192]{0}', space=vmem, size = 0x2000, scoped, tag = 'input window, operand 2']
    #allocation11 [shape = 's32[2]{0}', space=sflag, size = 0x8, scoped, tag = 'scoped memory for tpu_custom_call.1']
    #allocation12 [shape = 'u8[4096]{0}', space=vmem, size = 0x1000, scoped, tag = 'input window, operand 7, single buffered']
    #allocation13 [shape = 'u8[8192]{0}', space=vmem, size = 0x2000, scoped, tag = 'output window, operand 0']
    #allocation14 [shape = 'u8[16384]{0}', space=vmem, size = 0x4000, scoped, tag = 'output window, operand 1']
    #allocation15 [shape = 's32[2]{0}', space=sflag, size = 0x8, scoped, tag = 'scoped memory for tpu_custom_call.1']
    %21 = vsyncpa [#allocation8], 0
    %s22 = scalar_lea.sflag [#allocation8], 1
    %23 = vsyncpa %s22, 0
    %24 = vsyncpa [#allocation11], 0
    %s25 = scalar_lea.sflag [#allocation11], 1
    %26 = vsyncpa %s25, 0
    %27 = vsyncpa [#allocation9], 0
    %s28 = scalar_lea.sflag [#allocation9], 1
    %29 = vsyncpa %s28, 0
    %30 = vsyncpa [#allocation15], 0
    %s31 = scalar_lea.sflag [#allocation15], 1
    %32 = vsyncpa %s31, 0
    loop: start=0, step=1, limit=6
    $region2: #{tpu_custom_call.1} parent=1 // loop_pre_header
      _
    $region3: #{tpu_custom_call.1} parent=1 // loop_header
      %s34 = sphi 0, %s38
      %p35 = scmp.ge.s32.totalorder %s34, 6
      %s41 = sphi 0, %s53
      %s42 = sphi 0, %s49
      %s43 = sphi 0, %s41
      %s44 = sphi 0, %s42
      %s45 = sphi 0, %s43
      %s46 = sphi 0, %s44
      %s56 = sphi 0, %s58
      %s59 = sphi 0, %s56
      %s60 = sphi 0, %s59
      %s76 = sphi 0, %s60
      %s84 = sphi 0, %s86
      %s87 = sphi 0, %s84
      %s88 = sphi 0, %s87
      %s104 = sphi 0, %s88
      %s108 = sphi 0, %s108
      %s110 = sphi 0, %s108
      %s111 = sphi 0, %s110
      %s125 = sphi 0, %s111
      %s129 = sphi 0, %s129
      %s131 = sphi 0, %s129
      %s132 = sphi 0, %s131
      %s146 = sphi 0, %s132
      %s150 = sphi 0, %s150
      %s152 = sphi 0, %s150
      %s153 = sphi 0, %s152
      %s167 = sphi 0, %s153
      %s171 = sphi 0, %s171
      %s173 = sphi 0, %s171
      %s174 = sphi 0, %s173
      %s188 = sphi 0, %s174
      %s192 = sphi 0, %s192
      %s194 = sphi 0, %s192
      %s195 = sphi 0, %s194
      %s209 = sphi 0, %s195
      %s213 = sphi 0, %s213
      %s215 = sphi 0, %s213
      %s216 = sphi 0, %s215
      %s230 = sphi 0, %s216
      %s236 = sphi 0, %s238
      %s239 = sphi 0, %s236
      %s240 = sphi 0, %s239
      %s256 = sphi 0, %s240
      %s264 = sphi 0, %s266
      %s267 = sphi 0, %s264
      %s268 = sphi 0, %s267
      %s284 = sphi 0, %s268
      %s292 = sphi 0, %s294
      %s295 = sphi 0, %s292
      %s296 = sphi 0, %s295
      %s312 = sphi 0, %s296
    $region4: #{tpu_custom_call.1} parent=1 // loop_header_branch
      %37 = sbr.rel (%p35) target = $region8
    $region5: #{tpu_custom_call.1} parent=1 // loop_body
      %s39 = ssub.s32 %s34, 1
      %s40 = ssub.s32 %s34, 2
      %s47 = sadd.s32 1, %s42
      %p48 = scmp.ge.s32.totalorder %s47, 2
      %s49 = scalar_select %p48, 0, %s47
      %s50 = sadd.s32 1, %s41
      %s51 = scalar_select %p48, %s50, %s41
      %p52 = scmp.ge.s32.totalorder %s51, 2
      %s53 = scalar_select %p52, 0, %s51
      %s54 = ssub.s32 %s41, %s53
      %p55 = scmp.eq.s32.totalorder %s54, 0
      %s57 = sadd.s32 %s56, 1
      %s58 = scalar_select %p55, %s56, %s57
      %p61 = pneg %p55
      %p62 = scmp.eq.s32.totalorder %s34, 3
      %p63 = por %p61, %p62
      %p64 = scmp.ne.s32.totalorder %s56, %s59
      %p65 = scmp.eq.s32.totalorder %s34, 0
      %p66 = por %p64, %p65
      %p67 = scmp.ne.s32.totalorder %s56, %s59
      %p68 = scmp.eq.s32.totalorder %s39, 3
      %p69 = por %p67, %p68
      %p70 = scmp.ne.s32.totalorder %s59, %s60
      %p71 = scmp.eq.s32.totalorder %s39, 0
      %p72 = por %p70, %p71
      %p73 = scmp.ne.s32.totalorder %s59, %s60
      %p74 = scmp.eq.s32.totalorder %s40, 3
      %p75 = por %p73, %p74
      %p77 = scmp.ne.s32.totalorder %s60, %s76
      %p78 = scmp.eq.s32.totalorder %s40, 0
      %p79 = por %p77, %p78
      %s80 = ssub.s32 %s41, %s53
      %s81 = ssub.s32 %s42, %s49
      %s82 = sor.u32 %s80, %s81
      %p83 = scmp.eq.s32.totalorder %s82, 0
      %s85 = sadd.s32 %s84, 1
      %s86 = scalar_select %p83, %s84, %s85
      %p89 = pneg %p83
      %p90 = scmp.eq.s32.totalorder %s34, 3
      %p91 = por %p89, %p90
      %p92 = scmp.ne.s32.totalorder %s84, %s87
      %p93 = scmp.eq.s32.totalorder %s34, 0
      %p94 = por %p92, %p93
      %p95 = scmp.ne.s32.totalorder %s84, %s87
      %p96 = scmp.eq.s32.totalorder %s39, 3
      %p97 = por %p95, %p96
      %p98 = scmp.ne.s32.totalorder %s87, %s88
      %p99 = scmp.eq.s32.totalorder %s39, 0
      %p100 = por %p98, %p99
      %p101 = scmp.ne.s32.totalorder %s87, %s88
      %p102 = scmp.eq.s32.totalorder %s40, 3
      %p103 = por %p101, %p102
      %p105 = scmp.ne.s32.totalorder %s88, %s104
      %p106 = scmp.eq.s32.totalorder %s40, 0
      %p107 = por %p105, %p106
      %s109 = sadd.s32 %s108, 1
      %p112 = scmp.eq.s32.totalorder %s34, 3
      %p113 = scmp.ne.s32.totalorder %s108, %s110
      %p114 = scmp.eq.s32.totalorder %s34, 0
      %p115 = por %p113, %p114
      %p116 = scmp.ne.s32.totalorder %s108, %s110
      %p117 = scmp.eq.s32.totalorder %s39, 3
      %p118 = por %p116, %p117
      %p119 = scmp.ne.s32.totalorder %s110, %s111
      %p120 = scmp.eq.s32.totalorder %s39, 0
      %p121 = por %p119, %p120
      %p122 = scmp.ne.s32.totalorder %s110, %s111
      %p123 = scmp.eq.s32.totalorder %s40, 3
      %p124 = por %p122, %p123
      %p126 = scmp.ne.s32.totalorder %s111, %s125
      %p127 = scmp.eq.s32.totalorder %s40, 0
      %p128 = por %p126, %p127
      %s130 = sadd.s32 %s129, 1
      %p133 = scmp.eq.s32.totalorder %s34, 3
      %p134 = scmp.ne.s32.totalorder %s129, %s131
      %p135 = scmp.eq.s32.totalorder %s34, 0
      %p136 = por %p134, %p135
      %p137 = scmp.ne.s32.totalorder %s129, %s131
      %p138 = scmp.eq.s32.totalorder %s39, 3
      %p139 = por %p137, %p138
      %p140 = scmp.ne.s32.totalorder %s131, %s132
      %p141 = scmp.eq.s32.totalorder %s39, 0
      %p142 = por %p140, %p141
      %p143 = scmp.ne.s32.totalorder %s131, %s132
      %p144 = scmp.eq.s32.totalorder %s40, 3
      %p145 = por %p143, %p144
      %p147 = scmp.ne.s32.totalorder %s132, %s146
      %p148 = scmp.eq.s32.totalorder %s40, 0
      %p149 = por %p147, %p148
      %s151 = sadd.s32 %s150, 1
      %p154 = scmp.eq.s32.totalorder %s34, 3
      %p155 = scmp.ne.s32.totalorder %s150, %s152
      %p156 = scmp.eq.s32.totalorder %s34, 0
      %p157 = por %p155, %p156
      %p158 = scmp.ne.s32.totalorder %s150, %s152
      %p159 = scmp.eq.s32.totalorder %s39, 3
      %p160 = por %p158, %p159
      %p161 = scmp.ne.s32.totalorder %s152, %s153
      %p162 = scmp.eq.s32.totalorder %s39, 0
      %p163 = por %p161, %p162
      %p164 = scmp.ne.s32.totalorder %s152, %s153
      %p165 = scmp.eq.s32.totalorder %s40, 3
      %p166 = por %p164, %p165
      %p168 = scmp.ne.s32.totalorder %s153, %s167
      %p169 = scmp.eq.s32.totalorder %s40, 0
      %p170 = por %p168, %p169
      %s172 = sadd.s32 %s171, 1
      %p175 = scmp.eq.s32.totalorder %s34, 3
      %p176 = scmp.ne.s32.totalorder %s171, %s173
      %p177 = scmp.eq.s32.totalorder %s34, 0
      %p178 = por %p176, %p177
      %p179 = scmp.ne.s32.totalorder %s171, %s173
      %p180 = scmp.eq.s32.totalorder %s39, 3
      %p181 = por %p179, %p180
      %p182 = scmp.ne.s32.totalorder %s173, %s174
      %p183 = scmp.eq.s32.totalorder %s39, 0
      %p184 = por %p182, %p183
      %p185 = scmp.ne.s32.totalorder %s173, %s174
      %p186 = scmp.eq.s32.totalorder %s40, 3
      %p187 = por %p185, %p186
      %p189 = scmp.ne.s32.totalorder %s174, %s188
      %p190 = scmp.eq.s32.totalorder %s40, 0
      %p191 = por %p189, %p190
      %s193 = sadd.s32 %s192, 1
      %p196 = scmp.eq.s32.totalorder %s34, 3
      %p197 = scmp.ne.s32.totalorder %s192, %s194
      %p198 = scmp.eq.s32.totalorder %s34, 0
      %p199 = por %p197, %p198
      %p200 = scmp.ne.s32.totalorder %s192, %s194
      %p201 = scmp.eq.s32.totalorder %s39, 3
      %p202 = por %p200, %p201
      %p203 = scmp.ne.s32.totalorder %s194, %s195
      %p204 = scmp.eq.s32.totalorder %s39, 0
      %p205 = por %p203, %p204
      %p206 = scmp.ne.s32.totalorder %s194, %s195
      %p207 = scmp.eq.s32.totalorder %s40, 3
      %p208 = por %p206, %p207
      %p210 = scmp.ne.s32.totalorder %s195, %s209
      %p211 = scmp.eq.s32.totalorder %s40, 0
      %p212 = por %p210, %p211
      %s214 = sadd.s32 %s213, 1
      %p217 = scmp.eq.s32.totalorder %s34, 3
      %p218 = scmp.ne.s32.totalorder %s213, %s215
      %p219 = scmp.eq.s32.totalorder %s34, 0
      %p220 = por %p218, %p219
      %p221 = scmp.ne.s32.totalorder %s213, %s215
      %p222 = scmp.eq.s32.totalorder %s39, 3
      %p223 = por %p221, %p222
      %p224 = scmp.ne.s32.totalorder %s215, %s216
      %p225 = scmp.eq.s32.totalorder %s39, 0
      %p226 = por %p224, %p225
      %p227 = scmp.ne.s32.totalorder %s215, %s216
      %p228 = scmp.eq.s32.totalorder %s40, 3
      %p229 = por %p227, %p228
      %p231 = scmp.ne.s32.totalorder %s216, %s230
      %p232 = scmp.eq.s32.totalorder %s40, 0
      %p233 = por %p231, %p232
      %s234 = ssub.s32 %s42, %s49
      %p235 = scmp.eq.s32.totalorder %s234, 0
      %s237 = sadd.s32 %s236, 1
      %s238 = scalar_select %p235, %s236, %s237
      %p241 = pneg %p235
      %p242 = scmp.eq.s32.totalorder %s34, 3
      %p243 = por %p241, %p242
      %p244 = scmp.ne.s32.totalorder %s236, %s239
      %p245 = scmp.eq.s32.totalorder %s34, 0
      %p246 = por %p244, %p245
      %p247 = scmp.ne.s32.totalorder %s236, %s239
      %p248 = scmp.eq.s32.totalorder %s39, 3
      %p249 = por %p247, %p248
      %p250 = scmp.ne.s32.totalorder %s239, %s240
      %p251 = scmp.eq.s32.totalorder %s39, 0
      %p252 = por %p250, %p251
      %p253 = scmp.ne.s32.totalorder %s239, %s240
      %p254 = scmp.eq.s32.totalorder %s40, 3
      %p255 = por %p253, %p254
      %p257 = scmp.ne.s32.totalorder %s240, %s256
      %p258 = scmp.eq.s32.totalorder %s40, 0
      %p259 = por %p257, %p258
      %s260 = ssub.s32 %s41, %s53
      %s261 = ssub.s32 %s42, %s49
      %s262 = sor.u32 %s260, %s261
      %p263 = scmp.eq.s32.totalorder %s262, 0
      %s265 = sadd.s32 %s264, 1
      %s266 = scalar_select %p263, %s264, %s265
      %p269 = pneg %p263
      %p270 = scmp.eq.s32.totalorder %s34, 3
      %p271 = por %p269, %p270
      %p272 = scmp.ne.s32.totalorder %s264, %s267
      %p273 = scmp.eq.s32.totalorder %s34, 0
      %p274 = por %p272, %p273
      %p275 = scmp.ne.s32.totalorder %s264, %s267
      %p276 = scmp.eq.s32.totalorder %s39, 3
      %p277 = por %p275, %p276
      %p278 = scmp.ne.s32.totalorder %s267, %s268
      %p279 = scmp.eq.s32.totalorder %s39, 0
      %p280 = por %p278, %p279
      %p281 = scmp.ne.s32.totalorder %s267, %s268
      %p282 = scmp.eq.s32.totalorder %s40, 3
      %p283 = por %p281, %p282
      %p285 = scmp.ne.s32.totalorder %s268, %s284
      %p286 = scmp.eq.s32.totalorder %s40, 0
      %p287 = por %p285, %p286
      %s288 = ssub.s32 %s41, %s53
      %s289 = ssub.s32 %s42, %s49
      %s290 = sor.u32 %s288, %s289
      %p291 = scmp.eq.s32.totalorder %s290, 0
      %s293 = sadd.s32 %s292, 1
      %s294 = scalar_select %p291, %s292, %s293
      %p297 = pneg %p291
      %p298 = scmp.eq.s32.totalorder %s34, 3
      %p299 = por %p297, %p298
      %p300 = scmp.ne.s32.totalorder %s292, %s295
      %p301 = scmp.eq.s32.totalorder %s34, 0
      %p302 = por %p300, %p301
      %p303 = scmp.ne.s32.totalorder %s292, %s295
      %p304 = scmp.eq.s32.totalorder %s39, 3
      %p305 = por %p303, %p304
      %p306 = scmp.ne.s32.totalorder %s295, %s296
      %p307 = scmp.eq.s32.totalorder %s39, 0
      %p308 = por %p306, %p307
      %p309 = scmp.ne.s32.totalorder %s295, %s296
      %p310 = scmp.eq.s32.totalorder %s40, 3
      %p311 = por %p309, %p310
      %p313 = scmp.ne.s32.totalorder %s296, %s312
      %p314 = scmp.eq.s32.totalorder %s40, 0
      %p315 = por %p313, %p314
      %p316 = scmp.le.s32.totalorder 1, %s34
      %p317 = scmp.lt.s32.totalorder %s34, 5
      %p318 = pnand %p316, %p317
      %p319 = pneg %p318
      // Predicated region
      $region9: #{tpu_custom_call.1} parent=5 // pred_check
        _
      $region10: #{tpu_custom_call.1} parent=5 // pred_check_branch
        %321 = sbr.rel (%p318) target = $region12
      $region11: #{tpu_custom_call.1} parent=5 // pred_region
        %s322 = ssub.s32 %s34, 1
        // Predicated region
        $region13: #{tpu_custom_call.1} parent=11 // pred_check
          %p323 = pneg %p121
        $region14: #{tpu_custom_call.1} parent=11 // pred_check_branch
          %325 = sbr.rel (%p323) target = $region16
        $region15: #{tpu_custom_call.1} parent=11 // pred_region
          _
        $region16: #{tpu_custom_call.1} parent=11 // pred_fallthru
          _
        // Predicated region
        $region17: #{tpu_custom_call.1} parent=11 // pred_check
          %p326 = pneg %p142
        $region18: #{tpu_custom_call.1} parent=11 // pred_check_branch
          %328 = sbr.rel (%p326) target = $region20
        $region19: #{tpu_custom_call.1} parent=11 // pred_region
          _
        $region20: #{tpu_custom_call.1} parent=11 // pred_fallthru
          _
        // Predicated region
        $region21: #{tpu_custom_call.1} parent=11 // pred_check
          %p329 = pneg %p163
        $region22: #{tpu_custom_call.1} parent=11 // pred_check_branch
          %331 = sbr.rel (%p329) target = $region24
        $region23: #{tpu_custom_call.1} parent=11 // pred_region
          _
        $region24: #{tpu_custom_call.1} parent=11 // pred_fallthru
          _
        // Predicated region
        $region25: #{tpu_custom_call.1} parent=11 // pred_check
          %p332 = pneg %p184
        $region26: #{tpu_custom_call.1} parent=11 // pred_check_branch
          %334 = sbr.rel (%p332) target = $region28
        $region27: #{tpu_custom_call.1} parent=11 // pred_region
          _
        $region28: #{tpu_custom_call.1} parent=11 // pred_fallthru
          _
        // Predicated region
        $region29: #{tpu_custom_call.1} parent=11 // pred_check
          %p335 = pneg %p205
        $region30: #{tpu_custom_call.1} parent=11 // pred_check_branch
          %337 = sbr.rel (%p335) target = $region32
        $region31: #{tpu_custom_call.1} parent=11 // pred_region
          %s339 = ssub.s32 128, 128
          %340 = vsyncadd [#allocation11], %s339
          %s341 = sshll.u32 [#allocation12], 4
          %s342 = int_to_ptr.vmem [resolvable:$true] %s341
          %347 = dma.hbm_to_vmem [thread:$0]  %s7, 128, %s342, [#allocation11], 64, 64, 4
        $region32: #{tpu_custom_call.1} parent=11 // pred_fallthru
          _
        // Predicated region
        $region33: #{tpu_custom_call.1} parent=11 // pred_check
          %p348 = pneg %p226
        $region34: #{tpu_custom_call.1} parent=11 // pred_check_branch
          %350 = sbr.rel (%p348) target = $region36
        $region35: #{tpu_custom_call.1} parent=11 // pred_region
          _
        $region36: #{tpu_custom_call.1} parent=11 // pred_fallthru
          _
      $region12: #{tpu_custom_call.1} parent=5 // pred_fallthru
        _
      %p351 = scmp.lt.s32.totalorder %s34, 4
      // Predicated region
      $region37: #{tpu_custom_call.1} parent=5 // pred_check
        %p352 = pneg %p351
      $region38: #{tpu_custom_call.1} parent=5 // pred_check_branch
        %354 = sbr.rel (%p352) target = $region40
      $region39: #{tpu_custom_call.1} parent=5 // pred_region
        // Predicated region
        $region41: #{tpu_custom_call.1} parent=39 // pred_check
          %p355 = pneg %p66
        $region42: #{tpu_custom_call.1} parent=39 // pred_check_branch
          %357 = sbr.rel (%p355) target = $region44
        $region43: #{tpu_custom_call.1} parent=39 // pred_region
          %s358 = sand.u32 %s56, 1
          %s359 = scalar_lea.sflag [#allocation8], %s358
          %s360 = sand.u32 %s56, 1
          %s361 = smul.addr %s360, 16
          %s362 = scalar_lea.vmem [#allocation7], %s361
          %s364 = ssub.s32 256, 256
          %365 = vsyncadd %s359, %s364
          %s366 = smul.addr %s41, 2
          %s367 = smul.addr %s366, 128
          %s368 = scalar_lea.hbm %s1, %s367
          %s369 = sshll.u32 %s362, 4
          %s370 = int_to_ptr.vmem [resolvable:$true] %s369
          %375 = dma.hbm_to_vmem [thread:$0]  %s368, 256, %s370, %s359, 128, 128, 8
        $region44: #{tpu_custom_call.1} parent=39 // pred_fallthru
          _
        // Predicated region
        $region45: #{tpu_custom_call.1} parent=39 // pred_check
          %p376 = pneg %p94
        $region46: #{tpu_custom_call.1} parent=39 // pred_check_branch
          %378 = sbr.rel (%p376) target = $region48
        $region47: #{tpu_custom_call.1} parent=39 // pred_region
          %s379 = sand.u32 %s34, 1
          %s380 = scalar_lea.sflag [#allocation11], %s379
          %s381 = sand.u32 %s84, 1
          %s382 = smul.addr %s381, 8
          %s383 = scalar_lea.vmem [#allocation10], %s382
          %s385 = ssub.s32 128, 128
          %386 = vsyncadd %s380, %s385
          %s387 = smul.addr %s41, 2
          %s388 = sadd.s32 %s42, %s387
          %s389 = smul.addr %s388, 128
          %s390 = scalar_lea.hbm %s2, %s389
          %s392 = sshll.u32 %s383, 4
          %s393 = int_to_ptr.vmem [resolvable:$true] %s392
          %395 = dma.hbm_to_vmem [thread:$0]  %s390, 128, %s393, %s380
        $region48: #{tpu_custom_call.1} parent=39 // pred_fallthru
          _
        // Predicated region
        $region49: #{tpu_custom_call.1} parent=39 // pred_check
          %p396 = pneg %p246
        $region50: #{tpu_custom_call.1} parent=39 // pred_check_branch
          %398 = sbr.rel (%p396) target = $region52
        $region51: #{tpu_custom_call.1} parent=39 // pred_region
          %p399 = scmp.lt.s32.totalorder %s42, 1
          %s400 = scalar_select %p399, %s42, 1
          %s401 = smul.addr %s400, 8
          %s402 = scalar_lea.vmem %s9, %s401
        $region52: #{tpu_custom_call.1} parent=39 // pred_fallthru
          _
      $region40: #{tpu_custom_call.1} parent=5 // pred_fallthru
        _
      %p403 = scmp.le.s32.totalorder 1, %s34
      %p404 = scmp.lt.s32.totalorder %s34, 5
      %p405 = pnand %p403, %p404
      %p406 = pneg %p405
      // Predicated region
      $region53: #{tpu_custom_call.1} parent=5 // pred_check
        _
      $region54: #{tpu_custom_call.1} parent=5 // pred_check_branch
        %408 = sbr.rel (%p405) target = $region56
      $region55: #{tpu_custom_call.1} parent=5 // pred_region
        %s409 = ssub.s32 %s34, 1
        %s410 = sand.u32 %s59, 1
        %s411 = scalar_lea.sflag [#allocation8], %s410
        %s412 = sand.u32 %s59, 1
        %s413 = smul.addr %s412, 16
        %s414 = scalar_lea.vmem [#allocation7], %s413
        // Predicated region
        $region57: #{tpu_custom_call.1} parent=55 // pred_check
          %p415 = pneg %p72
        $region58: #{tpu_custom_call.1} parent=55 // pred_check_branch
          %417 = sbr.rel (%p415) target = $region60
        $region59: #{tpu_custom_call.1} parent=55 // pred_region
          %418 = dma.done %s411, 256
        $region60: #{tpu_custom_call.1} parent=55 // pred_fallthru
          _
        %s419 = sand.u32 %s39, 1
        %s420 = scalar_lea.sflag [#allocation11], %s419
        %s421 = sand.u32 %s87, 1
        %s422 = smul.addr %s421, 8
        %s423 = scalar_lea.vmem [#allocation10], %s422
        // Predicated region
        $region61: #{tpu_custom_call.1} parent=55 // pred_check
          %p424 = pneg %p100
        $region62: #{tpu_custom_call.1} parent=55 // pred_check_branch
          %426 = sbr.rel (%p424) target = $region64
        $region63: #{tpu_custom_call.1} parent=55 // pred_region
          %427 = dma.done %s420, 128
        $region64: #{tpu_custom_call.1} parent=55 // pred_fallthru
          _
        // Predicated region
        $region65: #{tpu_custom_call.1} parent=55 // pred_check
          %p428 = pneg %p205
        $region66: #{tpu_custom_call.1} parent=55 // pred_check_branch
          %430 = sbr.rel (%p428) target = $region68
        $region67: #{tpu_custom_call.1} parent=55 // pred_region
          %431 = dma.done [#allocation11], 128
        $region68: #{tpu_custom_call.1} parent=55 // pred_fallthru
          _
        %s432 = sand.u32 %s59, 1
        %s433 = scalar_lea.sflag [#allocation8], %s432
        %s434 = sand.u32 %s59, 1
        %s435 = smul.addr %s434, 16
        %s436 = scalar_lea.vmem [#allocation7], %s435
        %p437 = pneg %p72
        %p438 = pneg %p69
        %s439 = sand.u32 %s39, 1
        %s440 = scalar_lea.sflag [#allocation11], %s439
        %s441 = sand.u32 %s87, 1
        %s442 = smul.addr %s441, 8
        %s443 = scalar_lea.vmem [#allocation10], %s442
        %p444 = pneg %p100
        %p445 = pneg %p97
        %p446 = pneg %p121
        %p447 = pneg %p118
        %p448 = pneg %p142
        %p449 = pneg %p139
        %p450 = pneg %p163
        %p451 = pneg %p160
        %p452 = pneg %p184
        %p453 = pneg %p181
        %p454 = pneg %p205
        %p455 = pneg %p202
        %p456 = pneg %p226
        %p457 = pneg %p223
        %p458 = scmp.lt.s32.totalorder %s44, 1
        %s459 = scalar_select %p458, %s44, 1
        %s460 = smul.addr %s459, 8
        %s461 = scalar_lea.vmem %s9, %s460
        %p462 = pneg %p252
        %p463 = pneg %p249
        %p464 = pneg %p280
        %p465 = pneg %p277
        %s466 = sand.u32 %s267, 1
        %s467 = scalar_lea.sflag [#allocation9], %s466
        %s468 = sand.u32 %s267, 1
        %s469 = smul.addr %s468, 8
        %s470 = scalar_lea.vmem [#allocation13], %s469
        %p471 = pneg %p308
        %p472 = pneg %p305
        %s473 = sand.u32 %s295, 1
        %s474 = scalar_lea.sflag [#allocation15], %s473
        %s475 = sand.u32 %s295, 1
        %s476 = smul.addr %s475, 16
        %s477 = scalar_lea.vmem [#allocation14], %s476
        %p478 = scmp.lt.s32.totalorder %s44, 1
        %s479 = scalar_select %p478, %s44, 1
        %s480 = smul.addr %s479, 8
        %s481 = scalar_lea.vmem %s9, %s480
        %p483 = scmp.eq.s32.totalorder %s44, 0
        // Predicated region
        $region69: #{tpu_custom_call.1} parent=55 // pred_check
          %p484 = pneg %p483
        $region70: #{tpu_custom_call.1} parent=55 // pred_check_branch
          %486 = sbr.rel (%p484) target = $region72
        $region71: #{tpu_custom_call.1} parent=55 // pred_region
          %v487 = vld [vmem:[%s414] sm:$0xff]
          %v488 = vld [vmem:[%s414 + $0x8] sm:$0xff]
          %v489 = vpack.c.bf16 %v488, %v487
          %v490 = vld [vmem:[%s5] sm:$0xf]
          %v491 = vld [vmem:[%s5 + $0x4] sm:$0xf]
          %v492 = vld [vmem:[%s5 + $0x8] sm:$0xf]
          %v493 = vld [vmem:[%s5 + $0xc] sm:$0xf]
          %v494 = vld [vmem:[%s6] sm:$0x1]
          %v496 = vlaneseq
          %v497 = vshrl.u32 %v496, 7
          %v498 = vsub.s32 0, %v497
          %v499 = vrot.slane %v494, %v498
          %v505 = vunpack.c.l.b16 %v490
          %v506 = vunpack.c.l.b16 %v491
          %v507 = vunpack.c.l.b16 %v492
          %v508 = vunpack.c.l.b16 %v493
          %v509 = vpack.c.b16 %v506, %v505
          %v510 = vpack.c.b16 %v508, %v507
          %vm513 = vcmask 261120
          %v515 = vsel %vm513, %v489, 0
          %517 = vmatprep.subr.bf16.mxu0 0
          %518 = vmatpush1.bf16.msra.mxu0 0
          %519 = vmatprep.subr.bf16.mxu0 0
          %520 = vmatpush1.bf16.msra.mxu0 0
          %521 = vmatprep.subr.bf16.mxu0 0
          %522 = vmatpush1.bf16.msra.mxu0 0
          %523 = vmatprep.subr.bf16.mxu0 0
          %524 = vmatpush1.bf16.msra.mxu0 0
          %525 = vmatprep.subr.bf16.mxu0 0
          %526 = vmatpush1.bf16.msra.mxu0 0
          %527 = vmatprep.subr.bf16.mxu0 0
          %528 = vmatpush1.bf16.msra.mxu0 0
          %529 = vmatprep.subr.bf16.mxu0 0
          %530 = vmatpush1.bf16.msra.mxu0 %v510
          %531 = vmatprep.subr.bf16.mxu0 0
          %532 = vmatpush1.bf16.msra.mxu0 %v509
          %533 = vmatprep.subr.bf16.mxu0 0
          %534 = vmatpush2.bf16.msra.mxu0 0
          %535 = vmatprep.subr.bf16.mxu0 0
          %536 = vmatpush2.bf16.msra.mxu0 0
          %537 = vmatprep.subr.bf16.mxu0 0
          %538 = vmatpush2.bf16.msra.mxu0 0
          %539 = vmatprep.subr.bf16.mxu0 0
          %540 = vmatpush2.bf16.msra.mxu0 0
          %541 = vmatprep.subr.bf16.mxu0 0
          %542 = vmatpush2.bf16.msra.mxu0 0
          %543 = vmatprep.subr.bf16.mxu0 0
          %544 = vmatpush2.bf16.msra.mxu0 0
          %545 = vmatprep.subr.bf16.mxu0 0
          %546 = vmatpush2.bf16.msra.mxu0 0
          %547 = vmatprep.subr.bf16.mxu0 0
          %548 = vmatpush2.bf16.msra.mxu0 0
          %549 = vmatprep.mubr.bf16.mxu0 0
          %550 = vmatmul.mubr.bf16.gmra.mxu0 %v515
          %v551 = vpop.f32.mrf.mxu0
          %v552 = vadd.f32 %v499, %v551
          %v553 = vpop.f32.mrf.mxu0
          %v554 = vpop.f32.mrf.mxu0
          %v555 = vadd.f32 %v499, %v554
          %v556 = vpop.f32.mrf.mxu0
          %557 = vdwg.mxu0
          %v558 = vpack.c.bf16 %v555, %v552
          %v560 = vunpack.c.l.b16 %v558
          %v561 = vunpack.c.h.b16 %v558
          %v562 = vpack.c.b16 %v560, %v560
          %v563 = vpack.c.b16 %v561, %v561
          %vm566 = vcmask 60416
          %567 = vst.msk [vmem:[#allocation2] sm:$0xf] %vm566, %v562
          %568 = vst.msk [vmem:[#allocation2 + $0x4] sm:$0xf] %vm566, %v563
          %569 = vrot.lane.b32.xlu0 %v562, 112
          %v570 = vpop.permute.xlu0 %569
          %571 = vrot.lane.b32.xlu0 %v563, 112
          %v572 = vpop.permute.xlu0 %571
          %575 = vst.msk [vmem:[#allocation3] sm:$0xf] %vm566, %v570
          %576 = vst.msk [vmem:[#allocation3 + $0x4] sm:$0xf] %vm566, %v572
          %577 = vrot.lane.b32.xlu0 %v562, 120
          %v578 = vpop.permute.xlu0 %577
          %579 = vrot.lane.b32.xlu0 %v563, 120
          %v580 = vpop.permute.xlu0 %579
          %s583 = scalar_lea.vmem [#allocation2], 8
          %584 = vst.msk [vmem:[%s583] sm:$0xf] %vm566, %v578
          %585 = vst.msk [vmem:[%s583 + $0x4] sm:$0xf] %vm566, %v580
          %586 = vrot.lane.b32.xlu0 %v562, 104
          %v587 = vpop.permute.xlu0 %586
          %588 = vrot.lane.b32.xlu0 %v563, 104
          %v589 = vpop.permute.xlu0 %588
          %s592 = scalar_lea.vmem [#allocation3], 8
          %593 = vst.msk [vmem:[%s592] sm:$0xf] %vm566, %v587
          %594 = vst.msk [vmem:[%s592 + $0x4] sm:$0xf] %vm566, %v589
        $region72: #{tpu_custom_call.1} parent=55 // pred_fallthru
          _
        %v595 = vld [vmem:[%s423] sm:$0xff]
        %v596 = vpack.c.bf16 %v595, %v595
        %v597 = vld [vmem:[%s3] sm:$0xf]
        %v598 = vld [vmem:[%s3 + $0x4] sm:$0xf]
        %v599 = vld [vmem:[%s3 + $0x8] sm:$0xf]
        %v600 = vld [vmem:[%s3 + $0xc] sm:$0xf]
        %v601 = vld [vmem:[%s4] sm:$0x1]
        %v603 = vlaneseq
        %v604 = vshrl.u32 %v603, 7
        %v605 = vsub.s32 0, %v604
        %v606 = vrot.slane %v601, %v605
        %v612 = vunpack.c.l.b16 %v597
        %v613 = vunpack.c.l.b16 %v598
        %v614 = vunpack.c.l.b16 %v599
        %v615 = vunpack.c.l.b16 %v600
        %v616 = vpack.c.b16 %v613, %v612
        %v617 = vpack.c.b16 %v615, %v614
        %vm620 = vcmask 261120
        %v622 = vsel %vm620, %v596, 0
        %624 = vmatprep.subr.bf16.mxu0 0
        %625 = vmatpush1.bf16.msra.mxu0 0
        %626 = vmatprep.subr.bf16.mxu0 0
        %627 = vmatpush1.bf16.msra.mxu0 0
        %628 = vmatprep.subr.bf16.mxu0 0
        %629 = vmatpush1.bf16.msra.mxu0 0
        %630 = vmatprep.subr.bf16.mxu0 0
        %631 = vmatpush1.bf16.msra.mxu0 0
        %632 = vmatprep.subr.bf16.mxu0 0
        %633 = vmatpush1.bf16.msra.mxu0 0
        %634 = vmatprep.subr.bf16.mxu0 0
        %635 = vmatpush1.bf16.msra.mxu0 0
        %636 = vmatprep.subr.bf16.mxu0 0
        %637 = vmatpush1.bf16.msra.mxu0 %v617
        %638 = vmatprep.subr.bf16.mxu0 0
        %639 = vmatpush1.bf16.msra.mxu0 %v616
        %640 = vmatprep.subr.bf16.mxu0 0
        %641 = vmatpush2.bf16.msra.mxu0 0
        %642 = vmatprep.subr.bf16.mxu0 0
        %643 = vmatpush2.bf16.msra.mxu0 0
        %644 = vmatprep.subr.bf16.mxu0 0
        %645 = vmatpush2.bf16.msra.mxu0 0
        %646 = vmatprep.subr.bf16.mxu0 0
        %647 = vmatpush2.bf16.msra.mxu0 0
        %648 = vmatprep.subr.bf16.mxu0 0
        %649 = vmatpush2.bf16.msra.mxu0 0
        %650 = vmatprep.subr.bf16.mxu0 0
        %651 = vmatpush2.bf16.msra.mxu0 0
        %652 = vmatprep.subr.bf16.mxu0 0
        %653 = vmatpush2.bf16.msra.mxu0 0
        %654 = vmatprep.subr.bf16.mxu0 0
        %655 = vmatpush2.bf16.msra.mxu0 0
        %656 = vmatprep.mubr.bf16.mxu0 0
        %657 = vmatmul.mubr.bf16.gmra.mxu0 %v622
        %v658 = vpop.f32.mrf.mxu0
        %v659 = vadd.f32 %v606, %v658
        %v660 = vpop.f32.mrf.mxu0
        %v661 = vpop.f32.mrf.mxu0
        %v662 = vpop.f32.mrf.mxu0
        %663 = vdwg.mxu0
        %v664 = vmul.f32 %v659, 0.35355338
        %v665 = vpack.c.bf16 %v664, %v664
        %vm666 = vcmask 60416
        %667 = vst.msk [vmem:[#allocation4] sm:$0xf] %vm666, %v665
        %v669 = vunpack.c.l.b16 %v665
        %v670 = vpack.c.b16 %v669, %v669
        %671 = vrot.lane.b32.xlu0 %v670, 120
        %v672 = vpop.permute.xlu0 %671
        %s674 = scalar_lea.vmem [#allocation4], 4
        %675 = vst.msk [vmem:[%s674] sm:$0xf] %vm666, %v672
        %s676 = smul.u32 %s44, 8
        %v677 = vlaneseq
        %v678 = vshrl.u32 %v677, 7
        %v679 = vstv %s676
        %v680 = vadd.s32 %v679, %v678
        %vm681 = vcmp.ge.s32.totalorder %v680, 8
        %vm682 = vcmp.lt.s32.totalorder %v680, 12
        %vm683 = vmand %vm681, %vm682
        %s684 = smul.u32 %s43, 128
        %s685 = sld [smem:[#allocation6 + %s684]]
        %v686 = vstv %s685
        %v687 = vsel %vm683, %v686, 4294967295
        %vm688 = vcmp.ge.s32.totalorder %v680, 12
        %vm689 = vcmp.lt.s32.totalorder %v680, 16
        %vm690 = vmand %vm688, %vm689
        %s691 = sadd.s32 %s684, 1
        %s692 = sld [smem:[#allocation6 + %s691]]
        %v693 = vstv %s692
        %v694 = vsel %vm690, %v693, %v687
        %v695 = vlaneseq
        %v696 = vand.u32 %v695, 127
        %vm697 = vcmp.le.s32.totalorder %v696, %v694
        %v698 = vsel %vm697, 0.0, -1e+30
        %v699 = vld [vmem:[%s481] sm:$0xff]
        %v700 = vmax.f32 %v699, %v698
        %v701 = vld [vmem:[#allocation4] sm:$0xf]
        %v702 = vld [vmem:[#allocation4 + $0x4] sm:$0xf]
        %v703 = vld [vmem:[#allocation2] sm:$0xf]
        %v704 = vld [vmem:[#allocation2 + $0x4] sm:$0xf]
        %v705 = vld [vmem:[#allocation2 + $0x8] sm:$0xf]
        %v706 = vld [vmem:[#allocation2 + $0xc] sm:$0xf]
        %v709 = vunpack.c.l.b16 %v703
        %v710 = vunpack.c.l.b16 %v704
        %v711 = vpack.c.b16 %v710, %v709
        %vm712 = vcmask 64512
        %v714 = vsel %vm712, %v701, 0
        %v717 = vsel %vm712, %v711, 0
        %719 = vmatprep.subr.bf16.mxu0 0
        %720 = vmatpush1.bf16.xpose.msra.mxu0 0
        %721 = vmatprep.subr.bf16.mxu0 0
        %722 = vmatpush1.bf16.xpose.msra.mxu0 0
        %723 = vmatprep.subr.bf16.mxu0 0
        %724 = vmatpush1.bf16.xpose.msra.mxu0 0
        %725 = vmatprep.subr.bf16.mxu0 0
        %726 = vmatpush1.bf16.xpose.msra.mxu0 0
        %727 = vmatprep.subr.bf16.mxu0 0
        %728 = vmatpush1.bf16.xpose.msra.mxu0 0
        %729 = vmatprep.subr.bf16.mxu0 0
        %730 = vmatpush1.bf16.xpose.msra.mxu0 0
        %731 = vmatprep.subr.bf16.mxu0 0
        %732 = vmatpush1.bf16.xpose.msra.mxu0 0
        %733 = vmatprep.subr.bf16.mxu0 0
        %734 = vmatpush1.bf16.xpose.msra.mxu0 %v717
        %735 = vmatprep.subr.bf16.mxu0 0
        %736 = vmatpush2.bf16.xpose.msra.mxu0 0
        %737 = vmatprep.subr.bf16.mxu0 0
        %738 = vmatpush2.bf16.xpose.msra.mxu0 0
        %739 = vmatprep.subr.bf16.mxu0 0
        %740 = vmatpush2.bf16.xpose.msra.mxu0 0
        %741 = vmatprep.subr.bf16.mxu0 0
        %742 = vmatpush2.bf16.xpose.msra.mxu0 0
        %743 = vmatprep.subr.bf16.mxu0 0
        %744 = vmatpush2.bf16.xpose.msra.mxu0 0
        %745 = vmatprep.subr.bf16.mxu0 0
        %746 = vmatpush2.bf16.xpose.msra.mxu0 0
        %747 = vmatprep.subr.bf16.mxu0 0
        %748 = vmatpush2.bf16.xpose.msra.mxu0 0
        %749 = vmatprep.subr.bf16.mxu0 0
        %750 = vmatpush2.bf16.xpose.msra.mxu0 0
        %751 = vmatprep.mubr.bf16.mxu0 0
        %752 = vmatmul.mubr.bf16.gmra.mxu0 %v714
        %v753 = vpop.f32.mrf.mxu0
        %v754 = vadd.f32 %v700, %v753
        %v755 = vpop.f32.mrf.mxu0
        %v756 = vpop.f32.mrf.mxu0
        %v757 = vpop.f32.mrf.mxu0
        %758 = vdwg.mxu0
        %v761 = vunpack.c.l.b16 %v705
        %v762 = vunpack.c.l.b16 %v706
        %v763 = vpack.c.b16 %v762, %v761
        %v765 = vsel %vm712, %v702, 0
        %v768 = vsel %vm712, %v763, 0
        %770 = vmatprep.subr.bf16.mxu0 0
        %771 = vmatpush1.bf16.xpose.msra.mxu0 0
        %772 = vmatprep.subr.bf16.mxu0 0
        %773 = vmatpush1.bf16.xpose.msra.mxu0 0
        %774 = vmatprep.subr.bf16.mxu0 0
        %775 = vmatpush1.bf16.xpose.msra.mxu0 0
        %776 = vmatprep.subr.bf16.mxu0 0
        %777 = vmatpush1.bf16.xpose.msra.mxu0 0
        %778 = vmatprep.subr.bf16.mxu0 0
        %779 = vmatpush1.bf16.xpose.msra.mxu0 0
        %780 = vmatprep.subr.bf16.mxu0 0
        %781 = vmatpush1.bf16.xpose.msra.mxu0 0
        %782 = vmatprep.subr.bf16.mxu0 0
        %783 = vmatpush1.bf16.xpose.msra.mxu0 0
        %784 = vmatprep.subr.bf16.mxu0 0
        %785 = vmatpush1.bf16.xpose.msra.mxu0 %v768
        %786 = vmatprep.subr.bf16.mxu0 0
        %787 = vmatpush2.bf16.xpose.msra.mxu0 0
        %788 = vmatprep.subr.bf16.mxu0 0
        %789 = vmatpush2.bf16.xpose.msra.mxu0 0
        %790 = vmatprep.subr.bf16.mxu0 0
        %791 = vmatpush2.bf16.xpose.msra.mxu0 0
        %792 = vmatprep.subr.bf16.mxu0 0
        %793 = vmatpush2.bf16.xpose.msra.mxu0 0
        %794 = vmatprep.subr.bf16.mxu0 0
        %795 = vmatpush2.bf16.xpose.msra.mxu0 0
        %796 = vmatprep.subr.bf16.mxu0 0
        %797 = vmatpush2.bf16.xpose.msra.mxu0 0
        %798 = vmatprep.subr.bf16.mxu0 0
        %799 = vmatpush2.bf16.xpose.msra.mxu0 0
        %800 = vmatprep.subr.bf16.mxu0 0
        %801 = vmatpush2.bf16.xpose.msra.mxu0 0
        %802 = vmatprep.mubr.bf16.mxu0 0
        %803 = vmatmul.mubr.bf16.gmra.mxu0 %v765
        %v804 = vpop.f32.mrf.mxu0
        %v805 = vadd.f32 %v700, %v804
        %v806 = vpop.f32.mrf.mxu0
        %v807 = vpop.f32.mrf.mxu0
        %v808 = vpop.f32.mrf.mxu0
        %809 = vdwg.mxu0
        %vm810 = vcmask 130048
        %811 = vst.msk [vmem:[%s477] sm:$0xff] %vm810, %v754
        %812 = vst.msk [vmem:[%s477 + $0x8] sm:$0xff] %vm810, %v805
        %v813 = vsel %vm810, %v754, -inf
        %814 = vmax.xlane.f32.xlu0 %v813
        %v815 = vpop.xlane.xlu0 %814
        %v816 = vsel %vm810, %v805, -inf
        %817 = vmax.xlane.f32.xlu0 %v816
        %v818 = vpop.xlane.xlu0 %817
        %v819 = vsub.f32 %v754, %v815
        %v820 = vsub.f32 %v805, %v818
        %v821 = vmul.f32 %v819, 1.442695
        %v822 = vpow.pop %v821
        %v823 = vmul.f32 %v820, 1.442695
        %v824 = vpow.pop %v823
        %v825 = vsel %vm810, %v822, 0.0
        %826 = vadd.xlane.f32.xlu0 %v825
        %v827 = vpop.xlane.xlu0 %826
        %v828 = vsel %vm810, %v824, 0.0
        %829 = vadd.xlane.f32.xlu0 %v828
        %v830 = vpop.xlane.xlu0 %829
        %v831 = vrcp.pop %v827
        %v832 = vrcp.pop %v830
        %v833 = vmul.f32 %v822, %v831
        %v834 = vmul.f32 %v824, %v832
        %v835 = vpack.c.bf16 %v833, %v833
        %v836 = vpack.c.bf16 %v834, %v834
        %v837 = vld [vmem:[#allocation3] sm:$0xf]
        %v838 = vld [vmem:[#allocation3 + $0x4] sm:$0xf]
        %v839 = vld [vmem:[#allocation3 + $0x8] sm:$0xf]
        %v840 = vld [vmem:[#allocation3 + $0xc] sm:$0xf]
        %v843 = vunpack.c.l.b16 %v837
        %v844 = vunpack.c.l.b16 %v838
        %v845 = vpack.c.b16 %v844, %v843
        %v848 = vsel %vm810, %v835, 0
        %850 = vmatprep.subr.bf16.mxu0 0
        %851 = vmatpush1.bf16.msra.mxu0 0
        %852 = vmatprep.subr.bf16.mxu0 0
        %853 = vmatpush1.bf16.msra.mxu0 0
        %854 = vmatprep.subr.bf16.mxu0 0
        %855 = vmatpush1.bf16.msra.mxu0 0
        %856 = vmatprep.subr.bf16.mxu0 0
        %857 = vmatpush1.bf16.msra.mxu0 0
        %858 = vmatprep.subr.bf16.mxu0 0
        %859 = vmatpush1.bf16.msra.mxu0 0
        %860 = vmatprep.subr.bf16.mxu0 0
        %861 = vmatpush1.bf16.msra.mxu0 0
        %862 = vmatprep.subr.bf16.mxu0 0
        %863 = vmatpush1.bf16.msra.mxu0 0
        %864 = vmatprep.subr.bf16.mxu0 0
        %865 = vmatpush1.bf16.msra.mxu0 %v845
        %866 = vmatprep.subr.bf16.mxu0 0
        %867 = vmatpush2.bf16.msra.mxu0 0
        %868 = vmatprep.subr.bf16.mxu0 0
        %869 = vmatpush2.bf16.msra.mxu0 0
        %870 = vmatprep.subr.bf16.mxu0 0
        %871 = vmatpush2.bf16.msra.mxu0 0
        %872 = vmatprep.subr.bf16.mxu0 0
        %873 = vmatpush2.bf16.msra.mxu0 0
        %874 = vmatprep.subr.bf16.mxu0 0
        %875 = vmatpush2.bf16.msra.mxu0 0
        %876 = vmatprep.subr.bf16.mxu0 0
        %877 = vmatpush2.bf16.msra.mxu0 0
        %878 = vmatprep.subr.bf16.mxu0 0
        %879 = vmatpush2.bf16.msra.mxu0 0
        %880 = vmatprep.subr.bf16.mxu0 0
        %881 = vmatpush2.bf16.msra.mxu0 0
        %882 = vmatprep.mubr.bf16.mxu0 0
        %883 = vmatmul.mubr.bf16.gmra.mxu0 %v848
        %v884 = vpop.f32.mrf.mxu0
        %v885 = vadd.f32 0.0, %v884
        %v886 = vpop.f32.mrf.mxu0
        %v887 = vpop.f32.mrf.mxu0
        %v888 = vpop.f32.mrf.mxu0
        %889 = vdwg.mxu0
        %v892 = vunpack.c.l.b16 %v839
        %v893 = vunpack.c.l.b16 %v840
        %v894 = vpack.c.b16 %v893, %v892
        %v897 = vsel %vm810, %v836, 0
        %899 = vmatprep.subr.bf16.mxu0 0
        %900 = vmatpush1.bf16.msra.mxu0 0
        %901 = vmatprep.subr.bf16.mxu0 0
        %902 = vmatpush1.bf16.msra.mxu0 0
        %903 = vmatprep.subr.bf16.mxu0 0
        %904 = vmatpush1.bf16.msra.mxu0 0
        %905 = vmatprep.subr.bf16.mxu0 0
        %906 = vmatpush1.bf16.msra.mxu0 0
        %907 = vmatprep.subr.bf16.mxu0 0
        %908 = vmatpush1.bf16.msra.mxu0 0
        %909 = vmatprep.subr.bf16.mxu0 0
        %910 = vmatpush1.bf16.msra.mxu0 0
        %911 = vmatprep.subr.bf16.mxu0 0
        %912 = vmatpush1.bf16.msra.mxu0 0
        %913 = vmatprep.subr.bf16.mxu0 0
        %914 = vmatpush1.bf16.msra.mxu0 %v894
        %915 = vmatprep.subr.bf16.mxu0 0
        %916 = vmatpush2.bf16.msra.mxu0 0
        %917 = vmatprep.subr.bf16.mxu0 0
        %918 = vmatpush2.bf16.msra.mxu0 0
        %919 = vmatprep.subr.bf16.mxu0 0
        %920 = vmatpush2.bf16.msra.mxu0 0
        %921 = vmatprep.subr.bf16.mxu0 0
        %922 = vmatpush2.bf16.msra.mxu0 0
        %923 = vmatprep.subr.bf16.mxu0 0
        %924 = vmatpush2.bf16.msra.mxu0 0
        %925 = vmatprep.subr.bf16.mxu0 0
        %926 = vmatpush2.bf16.msra.mxu0 0
        %927 = vmatprep.subr.bf16.mxu0 0
        %928 = vmatpush2.bf16.msra.mxu0 0
        %929 = vmatprep.subr.bf16.mxu0 0
        %930 = vmatpush2.bf16.msra.mxu0 0
        %931 = vmatprep.mubr.bf16.mxu0 0
        %932 = vmatmul.mubr.bf16.gmra.mxu0 %v897
        %v933 = vpop.f32.mrf.mxu0
        %v934 = vadd.f32 0.0, %v933
        %v935 = vpop.f32.mrf.mxu0
        %v936 = vpop.f32.mrf.mxu0
        %v937 = vpop.f32.mrf.mxu0
        %938 = vdwg.mxu0
        %v939 = vpack.c.bf16 %v885, %v885
        %v940 = vpack.c.bf16 %v934, %v934
        %v941 = vld [vmem:[#allocation12] sm:$0xf]
        %v942 = vld [vmem:[#allocation12 + $0x4] sm:$0xf]
        %v944 = vsel %vm712, %v939, 0
        %vm946 = vcmask 1043456
        %v948 = vsel %vm946, %v941, 0
        %950 = vmatprep.subr.bf16.mxu0 0
        %951 = vmatpush1.bf16.msra.mxu0 0
        %952 = vmatprep.subr.bf16.mxu0 0
        %953 = vmatpush1.bf16.msra.mxu0 0
        %954 = vmatprep.subr.bf16.mxu0 0
        %955 = vmatpush1.bf16.msra.mxu0 0
        %956 = vmatprep.subr.bf16.mxu0 0
        %957 = vmatpush1.bf16.msra.mxu0 0
        %958 = vmatprep.subr.bf16.mxu0 0
        %959 = vmatpush1.bf16.msra.mxu0 0
        %960 = vmatprep.subr.bf16.mxu0 0
        %961 = vmatpush1.bf16.msra.mxu0 0
        %962 = vmatprep.subr.bf16.mxu0 0
        %963 = vmatpush1.bf16.msra.mxu0 0
        %964 = vmatprep.subr.bf16.mxu0 0
        %965 = vmatpush1.bf16.msra.mxu0 %v948
        %966 = vmatprep.subr.bf16.mxu0 0
        %967 = vmatpush2.bf16.msra.mxu0 0
        %968 = vmatprep.subr.bf16.mxu0 0
        %969 = vmatpush2.bf16.msra.mxu0 0
        %970 = vmatprep.subr.bf16.mxu0 0
        %971 = vmatpush2.bf16.msra.mxu0 0
        %972 = vmatprep.subr.bf16.mxu0 0
        %973 = vmatpush2.bf16.msra.mxu0 0
        %974 = vmatprep.subr.bf16.mxu0 0
        %975 = vmatpush2.bf16.msra.mxu0 0
        %976 = vmatprep.subr.bf16.mxu0 0
        %977 = vmatpush2.bf16.msra.mxu0 0
        %978 = vmatprep.subr.bf16.mxu0 0
        %979 = vmatpush2.bf16.msra.mxu0 0
        %980 = vmatprep.subr.bf16.mxu0 0
        %981 = vmatpush2.bf16.msra.mxu0 0
        %982 = vmatprep.mubr.bf16.mxu0 0
        %983 = vmatmul.mubr.bf16.gmra.mxu0 %v944
        %v984 = vpop.f32.mrf.mxu0
        %v985 = vadd.f32 0.0, %v984
        %v986 = vpop.f32.mrf.mxu0
        %v987 = vpop.f32.mrf.mxu0
        %v988 = vpop.f32.mrf.mxu0
        %989 = vdwg.mxu0
        %v991 = vsel %vm712, %v940, 0
        %v994 = vsel %vm946, %v942, 0
        %996 = vmatprep.subr.bf16.mxu0 0
        %997 = vmatpush1.bf16.msra.mxu0 0
        %998 = vmatprep.subr.bf16.mxu0 0
        %999 = vmatpush1.bf16.msra.mxu0 0
        %1000 = vmatprep.subr.bf16.mxu0 0
        %1001 = vmatpush1.bf16.msra.mxu0 0
        %1002 = vmatprep.subr.bf16.mxu0 0
        %1003 = vmatpush1.bf16.msra.mxu0 0
        %1004 = vmatprep.subr.bf16.mxu0 0
        %1005 = vmatpush1.bf16.msra.mxu0 0
        %1006 = vmatprep.subr.bf16.mxu0 0
        %1007 = vmatpush1.bf16.msra.mxu0 0
        %1008 = vmatprep.subr.bf16.mxu0 0
        %1009 = vmatpush1.bf16.msra.mxu0 0
        %1010 = vmatprep.subr.bf16.mxu0 0
        %1011 = vmatpush1.bf16.msra.mxu0 %v994
        %1012 = vmatprep.subr.bf16.mxu0 0
        %1013 = vmatpush2.bf16.msra.mxu0 0
        %1014 = vmatprep.subr.bf16.mxu0 0
        %1015 = vmatpush2.bf16.msra.mxu0 0
        %1016 = vmatprep.subr.bf16.mxu0 0
        %1017 = vmatpush2.bf16.msra.mxu0 0
        %1018 = vmatprep.subr.bf16.mxu0 0
        %1019 = vmatpush2.bf16.msra.mxu0 0
        %1020 = vmatprep.subr.bf16.mxu0 0
        %1021 = vmatpush2.bf16.msra.mxu0 0
        %1022 = vmatprep.subr.bf16.mxu0 0
        %1023 = vmatpush2.bf16.msra.mxu0 0
        %1024 = vmatprep.subr.bf16.mxu0 0
        %1025 = vmatpush2.bf16.msra.mxu0 0
        %1026 = vmatprep.subr.bf16.mxu0 0
        %1027 = vmatpush2.bf16.msra.mxu0 0
        %1028 = vmatprep.mubr.bf16.mxu0 0
        %1029 = vmatmul.mubr.bf16.gmra.mxu0 %v991
        %v1030 = vpop.f32.mrf.mxu0
        %v1031 = vadd.f32 0.0, %v1030
        %v1032 = vpop.f32.mrf.mxu0
        %v1033 = vpop.f32.mrf.mxu0
        %v1034 = vpop.f32.mrf.mxu0
        %1035 = vdwg.mxu0
        %v1036 = vsel %vm620, %v985, 0.0
        %v1037 = vsel %vm620, %v1031, 0.0
        %v1038 = vadd.f32 %v1036, %v1037
        %v1039 = vadd.f32 %v595, %v1038
        %v1040 = vld [vmem:[%s8] sm:$0x1]
        %v1042 = vlaneseq
        %v1043 = vshrl.u32 %v1042, 7
        %v1044 = vsub.s32 0, %v1043
        %v1045 = vrot.slane %v1040, %v1044
        %v1047 = vadd.f32 %v1039, %v1045
        %1048 = vst.msk [vmem:[%s470] sm:$0xff] %vm620, %v1047
        %s1049 = sand.u32 %s267, 1
        %s1050 = scalar_lea.sflag [#allocation9], %s1049
        %s1051 = sand.u32 %s267, 1
        %s1052 = smul.addr %s1051, 8
        %s1053 = scalar_lea.vmem [#allocation13], %s1052
        %s1054 = sand.u32 %s295, 1
        %s1055 = scalar_lea.sflag [#allocation15], %s1054
        %s1056 = sand.u32 %s295, 1
        %s1057 = smul.addr %s1056, 16
        %s1058 = scalar_lea.vmem [#allocation14], %s1057
        // Predicated region
        $region73: #{tpu_custom_call.1} parent=55 // pred_check
          %p1059 = pneg %p277
        $region74: #{tpu_custom_call.1} parent=55 // pred_check_branch
          %1061 = sbr.rel (%p1059) target = $region76
        $region75: #{tpu_custom_call.1} parent=55 // pred_region
          %s1063 = ssub.s32 128, 128
          %1064 = vsyncadd %s1050, %s1063
          %s1065 = smul.addr %s43, 2
          %s1066 = sadd.s32 %s44, %s1065
          %s1067 = smul.addr %s1066, 128
          %s1068 = scalar_lea.hbm %s10, %s1067
          %s1070 = sshll.u32 %s1053, 4
          %s1071 = int_to_ptr.vmem [resolvable:$true] %s1070
          %1073 = dma.vmem_to_hbm [thread:$0]  %s1071, 128, %s1068, %s1050
        $region76: #{tpu_custom_call.1} parent=55 // pred_fallthru
          _
        // Predicated region
        $region77: #{tpu_custom_call.1} parent=55 // pred_check
          %p1074 = pneg %p305
        $region78: #{tpu_custom_call.1} parent=55 // pred_check_branch
          %1076 = sbr.rel (%p1074) target = $region80
        $region79: #{tpu_custom_call.1} parent=55 // pred_region
          %s1078 = ssub.s32 256, 256
          %1079 = vsyncadd %s1055, %s1078
          %s1080 = smul.addr %s43, 4
          %s1081 = sadd.s32 %s44, %s1080
          %s1082 = smul.addr %s1081, 128
          %s1083 = scalar_lea.hbm %s11, %s1082
          %s1084 = sshll.u32 %s1058, 4
          %s1085 = int_to_ptr.vmem [resolvable:$true] %s1084
          %1090 = dma.vmem_to_hbm [thread:$0]  %s1085, 256, %s1083, %s1055, 128, 256, 8
        $region80: #{tpu_custom_call.1} parent=55 // pred_fallthru
          _
      $region56: #{tpu_custom_call.1} parent=5 // pred_fallthru
        _
      %p1091 = scmp.le.s32.totalorder 2, %s34
      // Predicated region
      $region81: #{tpu_custom_call.1} parent=5 // pred_check
        %p1092 = pneg %p1091
      $region82: #{tpu_custom_call.1} parent=5 // pred_check_branch
        %1094 = sbr.rel (%p1092) target = $region84
      $region83: #{tpu_custom_call.1} parent=5 // pred_region
        %s1095 = ssub.s32 %s34, 2
        // Predicated region
        $region85: #{tpu_custom_call.1} parent=83 // pred_check
          %p1096 = pneg %p283
        $region86: #{tpu_custom_call.1} parent=83 // pred_check_branch
          %1098 = sbr.rel (%p1096) target = $region88
        $region87: #{tpu_custom_call.1} parent=83 // pred_region
          %s1099 = sand.u32 %s268, 1
          %s1100 = scalar_lea.sflag [#allocation9], %s1099
          %s1101 = sand.u32 %s268, 1
          %s1102 = smul.addr %s1101, 8
          %s1103 = scalar_lea.vmem [#allocation13], %s1102
          %1104 = dma.done %s1100, 128
        $region88: #{tpu_custom_call.1} parent=83 // pred_fallthru
          _
        // Predicated region
        $region89: #{tpu_custom_call.1} parent=83 // pred_check
          %p1105 = pneg %p311
        $region90: #{tpu_custom_call.1} parent=83 // pred_check_branch
          %1107 = sbr.rel (%p1105) target = $region92
        $region91: #{tpu_custom_call.1} parent=83 // pred_region
          %s1108 = sand.u32 %s296, 1
          %s1109 = scalar_lea.sflag [#allocation15], %s1108
          %s1110 = sand.u32 %s296, 1
          %s1111 = smul.addr %s1110, 16
          %s1112 = scalar_lea.vmem [#allocation14], %s1111
          %1113 = dma.done %s1109, 256
        $region92: #{tpu_custom_call.1} parent=83 // pred_fallthru
          _
      $region84: #{tpu_custom_call.1} parent=5 // pred_fallthru
        _
    $region6: #{tpu_custom_call.1} parent=1 // loop_footer
      %s38 = sadd.s32 1, %s34
    $region7: #{tpu_custom_call.1} parent=1 // loop_footer_branch
      %33 = sbr.rel target = $region3
    $region8: #{tpu_custom_call.1} parent=1 // loop_exit
      _
    %1114 = vsyncpa [#allocation8], 1
    %s1115 = scalar_lea.sflag [#allocation8], 1
    %1116 = vsyncpa %s1115, 1
    %1117 = vsyncpa [#allocation11], 1
    %s1118 = scalar_lea.sflag [#allocation11], 1
    %1119 = vsyncpa %s1118, 1
    %1120 = vsyncpa [#allocation9], 1
    %s1121 = scalar_lea.sflag [#allocation9], 1
    %1122 = vsyncpa %s1121, 1
    %1123 = vsyncpa [#allocation15], 1
    %s1124 = scalar_lea.sflag [#allocation15], 1
    %1125 = vsyncpa %s1124, 1

</llo_original>
